<compile_context>
chip_gen: v5e
topology: v5e:2x2
jax: 0.10.0
libtpu: 0.0.40
codegen_flags: <defaults>
</compile_context>

<pallas_src>
import functools

import jax
import jax.numpy as jnp
from jax.experimental import pallas as pl
from jax.experimental.pallas import tpu as pltpu

_HIGHEST = jax.lax.Precision.HIGHEST


def _imfusion_kernel(x_ref, y_ref, w1bd_ref, b1bd_ref, w2t_ref, b2_ref,
                     wgybd_ref, wgx_ref, bg_ref, z_ref, *, S, M, N, H):
    """One grid step == `rows // S` whole batches (rows = TB * S).

    x_ref: (rows, M*H)  row r holds the M member vectors of x at that (b, s)
    y_ref: (rows, N*H)  row r holds the N position vectors of y at that (b, s)
    z_ref: (rows, N*H)  output, same layout as y
    """
    rows = x_ref.shape[0]
    NH = N * H

    x_full = x_ref[...]                                   # (rows, M*H)
    y_full = y_ref[...]                                   # (rows, N*H)

    # ---- MultiHeadSelfAtt (additive attention pooling over m) -------------
    # One MXU pass over the block-diagonal W1: segment m of t == x_m @ w1.
    t = jnp.tanh(
        jnp.dot(x_full, w1bd_ref[...], precision=_HIGHEST,
                preferred_element_type=jnp.float32) + b1bd_ref[...])
    # Scoring (*,H)@(H,1) would use 1/128 of the MXU columns -> VPU mul + XLU
    # lane reduce per member segment instead.
    score_elem = t * w2t_ref[...]                         # (rows, M*H)
    b2 = b2_ref[...]                                      # (1, 1)
    s_cols = [jnp.sum(score_elem[:, m * H:(m + 1) * H], axis=-1, keepdims=True)
              + b2 for m in range(M)]                     # M x (rows, 1)

    s_max = functools.reduce(jnp.maximum, s_cols)
    e_cols = [jnp.exp(s - s_max) for s in s_cols]
    denom = functools.reduce(lambda a, b: a + b, e_cols)
    inv = 1.0 / denom                                     # exact (matches torch softmax)

    self_x = (e_cols[0] * inv) * x_full[:, 0:H]
    for m in range(1, M):
        self_x = self_x + (e_cols[m] * inv) * x_full[:, m * H:(m + 1) * H]

    # ---- i-1 sequence shift: row r gets self_x computed from row r-1 ------
    # One-row rotation (wrap row lands on an s==0 row, overwritten below).
    self_x = jnp.concatenate(
        [self_x[rows - 1:rows, :], self_x[:rows - 1, :]], axis=0)   # (rows, H)

    # ---- gate = sigmoid(Linear(cat([y, i_x], -1))), z = y + i_x * gate ----
    # i_x half computed ONCE per row, lane-tiled over the N positions; y half
    # is one block-diagonal MXU pass.
    gx = jnp.dot(self_x, wgx_ref[...], precision=_HIGHEST,
                 preferred_element_type=jnp.float32) + bg_ref[...]  # (rows, H)
    gx_t = jnp.concatenate([gx] * N, axis=-1)                       # (rows, N*H)
    ix_t = jnp.concatenate([self_x] * N, axis=-1)                   # (rows, N*H)

    gate = jax.nn.sigmoid(
        jnp.dot(y_full, wgybd_ref[...], precision=_HIGHEST,
                preferred_element_type=jnp.float32) + gx_t)         # (rows, N*H)

    # Rows with s == 0 keep y unchanged (z[:, 0] = y[:, 0]).
    row_idx = jax.lax.broadcasted_iota(jnp.int32, (rows, NH), 0)
    is_seq_start = (row_idx % S) == 0
    z_full = jnp.where(is_seq_start, y_full, y_full + ix_t * gate)

    # Single full-width, unmasked store.
    z_ref[...] = z_full.astype(z_ref.dtype)


def _pick_batch_tile(B, S, MH, NH, itemsize=4, budget=8 * 1024 * 1024):
    """Largest group of whole batches per grid step that keeps the
    double-buffered x/y/z blocks under `budget` bytes of VMEM."""
    valid = [tb for tb in range(1, B + 1)
             if B % tb == 0 and (tb == B or (tb * S) % 8 == 0)]
    fitting = [tb for tb in valid
               if 2 * tb * S * (MH + 2 * NH) * itemsize <= budget]
    if fitting:
        return max(fitting)
    # TODO(synk): if even one batch does not fit, add a sequence-tile axis.
    return min(valid)


def imfusion_pallas(x, y, params, *, batch_tile=None):
    """x: (B, S, M, H), y: (B, S, N, H) -> (B, S, N, H)."""
    w1, b1, w2, b2, wgy, wgx, bg = params
    B, S, M, H = x.shape
    N = y.shape[2]
    MH, NH = M * H, N * H

    if S == 1:
        return y                       # z[:, 0] = y[:, 0] and nothing else

    # Free reshapes only: fold (B, S) into rows, merge trailing dims.
    x2 = x.reshape(B * S, MH)
    y2 = y.reshape(B * S, NH)

    # Trace-time weight prep: block-diagonal fusions + lane-tiled biases.
    w1bd = jnp.kron(jnp.eye(M, dtype=w1.dtype), w1)        # (M*H, M*H)
    wgybd = jnp.kron(jnp.eye(N, dtype=wgy.dtype), wgy)     # (N*H, N*H)
    b1bd = jnp.tile(b1.reshape(1, H), (1, M))              # (1, M*H)
    w2t = jnp.tile(w2.reshape(1, H), (1, M))               # (1, M*H)
    b2r = b2.reshape(1, 1)
    bgr = bg.reshape(1, H)

    if batch_tile is None:
        batch_tile = _pick_batch_tile(B, S, MH, NH)
    TB = batch_tile
    rows = TB * S
    grid = (B // TB,)

    full = lambda a: pl.BlockSpec(a.shape, lambda i: (0,) * a.ndim)
    kernel = functools.partial(_imfusion_kernel, S=S, M=M, N=N, H=H)

    z2 = pl.pallas_call(
        kernel,
        out_shape=jax.ShapeDtypeStruct((B * S, NH), y.dtype),
        grid=grid,
        in_specs=[
            pl.BlockSpec((rows, MH), lambda i: (i, 0)),    # x rows
            pl.BlockSpec((rows, NH), lambda i: (i, 0)),    # y rows
            full(w1bd), full(b1bd), full(w2t), full(b2r),
            full(wgybd), full(wgx), full(bgr),
        ],
        out_specs=pl.BlockSpec((rows, NH), lambda i: (i, 0)),
        compiler_params=pltpu.CompilerParams(
            dimension_semantics=("parallel",),
            vmem_limit_bytes=48 * 1024 * 1024),
    )(x2, y2, w1bd, b1bd, w2t, b2r, wgybd, wgx, bgr)

    return z2.reshape(B, S, N, H)


def imfusion_ref(x, y, params):
    """Pure-JAX reference mirroring the PyTorch forward (f32 matmuls)."""
    w1, b1, w2, b2, wgy, wgx, bg = params
    S = x.shape[1]
    hdot = lambda a, b: jnp.matmul(a, b, precision=_HIGHEST)

    def im_layer(xp, yc):              # xp: (B, M, H), yc: (B, N, H)
        t = jnp.tanh(hdot(xp, w1) + b1)
        s = hdot(t, w2) + b2           # (B, M, 1)
        alpha = jax.nn.softmax(s, axis=1)
        self_x = jnp.sum(alpha * xp, axis=1)                 # (B, H)
        i_x = jnp.broadcast_to(self_x[:, None, :], yc.shape)
        gate = jax.nn.sigmoid(hdot(yc, wgy) + hdot(i_x, wgx) + bg)
        return yc + i_x * gate

    zs = [y[:, 0]]
    for i in range(1, S):
        zs.append(im_layer(x[:, i - 1], y[:, i]))
    return jnp.stack(zs, axis=1)


def make_params(key, h):
    ks = jax.random.split(key, 7)
    scale = 1.0 / jnp.sqrt(h)
    w1 = jax.random.normal(ks[0], (h, h), jnp.float32) * scale   # att Linear 1
    b1 = jax.random.normal(ks[1], (1, h), jnp.float32) * 0.1
    w2 = jax.random.normal(ks[2], (h, 1), jnp.float32) * scale   # att Linear 2
    b2 = jax.random.normal(ks[3], (1, 1), jnp.float32) * 0.1
    # gate Linear(2h -> h) stored as two (h, h) halves [y-half, i_x-half].
    # NOTE: for real PyTorch weights (nn.Linear stores (out, in)):
    #   wgy = W[:, :h].T, wgx = W[:, h:].T (matching cat([y, i_x], -1)).
    wgy = jax.random.normal(ks[4], (h, h), jnp.float32) * scale
    wgx = jax.random.normal(ks[5], (h, h), jnp.float32) * scale
    bg = jax.random.normal(ks[6], (1, h), jnp.float32) * 0.1
    return (w1, b1, w2, b2, wgy, wgx, bg)


if __name__ == "__main__":
    B, S, M, N, H = 2, 8, 4, 6, 32
    key = jax.random.PRNGKey(0)
    kx, ky, kp = jax.random.split(key, 3)
    x = jax.random.normal(kx, (B, S, M, H), jnp.float32)
    y = jax.random.normal(ky, (B, S, N, H), jnp.float32)
    params = make_params(kp, H)

    z = jax.block_until_ready(imfusion_pallas(x, y, params))
    z_ref = imfusion_ref(x, y, params)

    assert z.shape == (B, S, N, H)
    max_err = float(jnp.max(jnp.abs(z - z_ref)))
    assert jnp.allclose(z, z_ref, atol=5e-3, rtol=5e-3), (
        f"mismatch vs reference (max abs err {max_err})")
    print("KERNEL_OK")
</pallas_src>

<mosaic_0001>
module attributes {stable_mosaic.version = 11 : i64} {
  func.func @_imfusion_kernel(%arg0: i32, %arg1: memref<16x128xf32, #tpu.memory_space<vmem>>, %arg2: memref<16x192xf32, #tpu.memory_space<vmem>>, %arg3: memref<128x128xf32, #tpu.memory_space<vmem>>, %arg4: memref<1x128xf32, #tpu.memory_space<vmem>>, %arg5: memref<1x128xf32, #tpu.memory_space<vmem>>, %arg6: memref<1x1xf32, #tpu.memory_space<vmem>>, %arg7: memref<192x192xf32, #tpu.memory_space<vmem>>, %arg8: memref<32x32xf32, #tpu.memory_space<vmem>>, %arg9: memref<1x32xf32, #tpu.memory_space<vmem>>, %arg10: memref<16x192xf32, #tpu.memory_space<vmem>>) attributes {dimension_semantics = [#tpu.dimension_semantics<parallel>], iteration_bounds = array<i64: 1>, scalar_prefetch = 0 : i64, scratch_operands = 0 : i64, tpu.core_type = #tpu.core_type<tc>, window_params = [{transform_indices = @transform_0, window_bounds = array<i64: 16, 128>}, {transform_indices = @transform_1, window_bounds = array<i64: 16, 192>}, {pipeline_mode = #tpu.pipeline_mode<synchronous>, transform_indices = @transform_2, window_bounds = array<i64: 128, 128>}, {pipeline_mode = #tpu.pipeline_mode<synchronous>, transform_indices = @transform_3, window_bounds = array<i64: 1, 128>}, {pipeline_mode = #tpu.pipeline_mode<synchronous>, transform_indices = @transform_4, window_bounds = array<i64: 1, 128>}, {pipeline_mode = #tpu.pipeline_mode<synchronous>, transform_indices = @transform_5, window_bounds = array<i64: 1, 1>}, {pipeline_mode = #tpu.pipeline_mode<synchronous>, transform_indices = @transform_6, window_bounds = array<i64: 192, 192>}, {pipeline_mode = #tpu.pipeline_mode<synchronous>, transform_indices = @transform_7, window_bounds = array<i64: 32, 32>}, {pipeline_mode = #tpu.pipeline_mode<synchronous>, transform_indices = @transform_8, window_bounds = array<i64: 1, 32>}, {transform_indices = @transform_9, window_bounds = array<i64: 16, 192>}]} {
    %c0 = arith.constant 0 : index
    %c0_0 = arith.constant 0 : index
    %0 = vector.load %arg1[%c0, %c0_0] : memref<16x128xf32, #tpu.memory_space<vmem>>, vector<16x128xf32>
    %c0_1 = arith.constant 0 : index
    %c0_2 = arith.constant 0 : index
    %1 = vector.load %arg2[%c0_1, %c0_2] : memref<16x192xf32, #tpu.memory_space<vmem>>, vector<16x192xf32>
    %c0_3 = arith.constant 0 : index
    %c0_4 = arith.constant 0 : index
    %2 = vector.load %arg3[%c0_3, %c0_4] : memref<128x128xf32, #tpu.memory_space<vmem>>, vector<128x128xf32>
    %cst = arith.constant dense<0.000000e+00> : vector<16x128xf32>
    %3 = tpu.matmul %0, %2, %cst {dimension_numbers = #tpu.dot_dimension_numbers<[1], [0], [0], [1], [0, 0, 1, 1], [], []>, precision = #tpu.contract_precision<fp32>} : vector<16x128xf32>, vector<128x128xf32>, vector<16x128xf32> -> vector<16x128xf32>
    %c0_5 = arith.constant 0 : index
    %c0_6 = arith.constant 0 : index
    %4 = vector.load %arg4[%c0_5, %c0_6] : memref<1x128xf32, #tpu.memory_space<vmem>>, vector<1x128xf32>
    %5 = vector.broadcast %4 : vector<1x128xf32> to vector<16x128xf32>
    %6 = arith.addf %3, %5 : vector<16x128xf32>
    %7 = math.tanh %6 : vector<16x128xf32>
    %c0_7 = arith.constant 0 : index
    %c0_8 = arith.constant 0 : index
    %8 = vector.load %arg5[%c0_7, %c0_8] : memref<1x128xf32, #tpu.memory_space<vmem>>, vector<1x128xf32>
    %9 = vector.broadcast %8 : vector<1x128xf32> to vector<16x128xf32>
    %10 = arith.mulf %7, %9 : vector<16x128xf32>
    %c0_9 = arith.constant 0 : index
    %c0_10 = arith.constant 0 : index
    %11 = vector.load %arg6[%c0_9, %c0_10] : memref<1x1xf32, #tpu.memory_space<vmem>>, vector<1x1xf32>
    %12 = vector.extract_strided_slice %10 {offsets = [0, 0], sizes = [16, 32], strides = [1, 1]} : vector<16x128xf32> to vector<16x32xf32>
    %cst_11 = arith.constant dense<0.000000e+00> : vector<16xf32>
    %13 = vector.multi_reduction <add>, %12, %cst_11 [1] : vector<16x32xf32> to vector<16xf32>
    %14 = vector.shape_cast %13 : vector<16xf32> to vector<16x1xf32>
    %15 = vector.broadcast %11 : vector<1x1xf32> to vector<16x1xf32>
    %16 = arith.addf %14, %15 : vector<16x1xf32>
    %17 = vector.extract_strided_slice %10 {offsets = [0, 32], sizes = [16, 32], strides = [1, 1]} : vector<16x128xf32> to vector<16x32xf32>
    %cst_12 = arith.constant dense<0.000000e+00> : vector<16xf32>
    %18 = vector.multi_reduction <add>, %17, %cst_12 [1] : vector<16x32xf32> to vector<16xf32>
    %19 = vector.shape_cast %18 : vector<16xf32> to vector<16x1xf32>
    %20 = vector.broadcast %11 : vector<1x1xf32> to vector<16x1xf32>
    %21 = arith.addf %19, %20 : vector<16x1xf32>
    %22 = vector.extract_strided_slice %10 {offsets = [0, 64], sizes = [16, 32], strides = [1, 1]} : vector<16x128xf32> to vector<16x32xf32>
    %cst_13 = arith.constant dense<0.000000e+00> : vector<16xf32>
    %23 = vector.multi_reduction <add>, %22, %cst_13 [1] : vector<16x32xf32> to vector<16xf32>
    %24 = vector.shape_cast %23 : vector<16xf32> to vector<16x1xf32>
    %25 = vector.broadcast %11 : vector<1x1xf32> to vector<16x1xf32>
    %26 = arith.addf %24, %25 : vector<16x1xf32>
    %27 = vector.extract_strided_slice %10 {offsets = [0, 96], sizes = [16, 32], strides = [1, 1]} : vector<16x128xf32> to vector<16x32xf32>
    %cst_14 = arith.constant dense<0.000000e+00> : vector<16xf32>
    %28 = vector.multi_reduction <add>, %27, %cst_14 [1] : vector<16x32xf32> to vector<16xf32>
    %29 = vector.shape_cast %28 : vector<16xf32> to vector<16x1xf32>
    %30 = vector.broadcast %11 : vector<1x1xf32> to vector<16x1xf32>
    %31 = arith.addf %29, %30 : vector<16x1xf32>
    %32 = arith.maximumf %16, %21 : vector<16x1xf32>
    %33 = arith.maximumf %32, %26 : vector<16x1xf32>
    %34 = arith.maximumf %33, %31 : vector<16x1xf32>
    %35 = arith.subf %16, %34 : vector<16x1xf32>
    %36 = math.exp %35 : vector<16x1xf32>
    %37 = arith.subf %21, %34 : vector<16x1xf32>
    %38 = math.exp %37 : vector<16x1xf32>
    %39 = arith.subf %26, %34 : vector<16x1xf32>
    %40 = math.exp %39 : vector<16x1xf32>
    %41 = arith.subf %31, %34 : vector<16x1xf32>
    %42 = math.exp %41 : vector<16x1xf32>
    %43 = arith.addf %36, %38 : vector<16x1xf32>
    %44 = arith.addf %43, %40 : vector<16x1xf32>
    %45 = arith.addf %44, %42 : vector<16x1xf32>
    %cst_15 = arith.constant 1.000000e+00 : f32
    %46 = vector.broadcast %cst_15 : f32 to vector<16x1xf32>
    %47 = arith.divf %46, %45 : vector<16x1xf32>
    %48 = arith.mulf %36, %47 : vector<16x1xf32>
    %49 = vector.extract_strided_slice %0 {offsets = [0, 0], sizes = [16, 32], strides = [1, 1]} : vector<16x128xf32> to vector<16x32xf32>
    %50 = vector.broadcast %48 : vector<16x1xf32> to vector<16x32xf32>
    %51 = arith.mulf %50, %49 : vector<16x32xf32>
    %52 = arith.mulf %38, %47 : vector<16x1xf32>
    %53 = vector.extract_strided_slice %0 {offsets = [0, 32], sizes = [16, 32], strides = [1, 1]} : vector<16x128xf32> to vector<16x32xf32>
    %54 = vector.broadcast %52 : vector<16x1xf32> to vector<16x32xf32>
    %55 = arith.mulf %54, %53 : vector<16x32xf32>
    %56 = arith.addf %51, %55 : vector<16x32xf32>
    %57 = arith.mulf %40, %47 : vector<16x1xf32>
    %58 = vector.extract_strided_slice %0 {offsets = [0, 64], sizes = [16, 32], strides = [1, 1]} : vector<16x128xf32> to vector<16x32xf32>
    %59 = vector.broadcast %57 : vector<16x1xf32> to vector<16x32xf32>
    %60 = arith.mulf %59, %58 : vector<16x32xf32>
    %61 = arith.addf %56, %60 : vector<16x32xf32>
    %62 = arith.mulf %42, %47 : vector<16x1xf32>
    %63 = vector.extract_strided_slice %0 {offsets = [0, 96], sizes = [16, 32], strides = [1, 1]} : vector<16x128xf32> to vector<16x32xf32>
    %64 = vector.broadcast %62 : vector<16x1xf32> to vector<16x32xf32>
    %65 = arith.mulf %64, %63 : vector<16x32xf32>
    %66 = arith.addf %61, %65 : vector<16x32xf32>
    %67 = vector.extract_strided_slice %66 {offsets = [15, 0], sizes = [1, 32], strides = [1, 1]} : vector<16x32xf32> to vector<1x32xf32>
    %68 = vector.extract_strided_slice %66 {offsets = [0, 0], sizes = [15, 32], strides = [1, 1]} : vector<16x32xf32> to vector<15x32xf32>
    %69 = tpu.concatenate %67, %68 in 0 : vector<1x32xf32>, vector<15x32xf32> -> vector<16x32xf32>
    %c0_16 = arith.constant 0 : index
    %c0_17 = arith.constant 0 : index
    %70 = vector.load %arg8[%c0_16, %c0_17] : memref<32x32xf32, #tpu.memory_space<vmem>>, vector<32x32xf32>
    %cst_18 = arith.constant dense<0.000000e+00> : vector<16x32xf32>
    %71 = tpu.matmul %69, %70, %cst_18 {dimension_numbers = #tpu.dot_dimension_numbers<[1], [0], [0], [1], [0, 0, 1, 1], [], []>, precision = #tpu.contract_precision<fp32>} : vector<16x32xf32>, vector<32x32xf32>, vector<16x32xf32> -> vector<16x32xf32>
    %c0_19 = arith.constant 0 : index
    %c0_20 = arith.constant 0 : index
    %72 = vector.load %arg9[%c0_19, %c0_20] : memref<1x32xf32, #tpu.memory_space<vmem>>, vector<1x32xf32>
    %73 = vector.broadcast %72 : vector<1x32xf32> to vector<16x32xf32>
    %74 = arith.addf %71, %73 : vector<16x32xf32>
    %75 = tpu.concatenate %74, %74, %74, %74, %74, %74 in 1 : vector<16x32xf32>, vector<16x32xf32>, vector<16x32xf32>, vector<16x32xf32>, vector<16x32xf32>, vector<16x32xf32> -> vector<16x192xf32>
    %76 = tpu.concatenate %69, %69, %69, %69, %69, %69 in 1 : vector<16x32xf32>, vector<16x32xf32>, vector<16x32xf32>, vector<16x32xf32>, vector<16x32xf32>, vector<16x32xf32> -> vector<16x192xf32>
    %c0_21 = arith.constant 0 : index
    %c0_22 = arith.constant 0 : index
    %77 = vector.load %arg7[%c0_21, %c0_22] : memref<192x192xf32, #tpu.memory_space<vmem>>, vector<192x192xf32>
    %cst_23 = arith.constant dense<0.000000e+00> : vector<16x192xf32>
    %78 = tpu.matmul %1, %77, %cst_23 {dimension_numbers = #tpu.dot_dimension_numbers<[1], [0], [0], [1], [0, 0, 1, 1], [], []>, precision = #tpu.contract_precision<fp32>} : vector<16x192xf32>, vector<192x192xf32>, vector<16x192xf32> -> vector<16x192xf32>
    %79 = arith.addf %78, %75 : vector<16x192xf32>
    %80 = arith.negf %79 : vector<16x192xf32>
    %81 = math.exp %80 : vector<16x192xf32>
    %cst_24 = arith.constant 1.000000e+00 : f32
    %82 = vector.broadcast %cst_24 : f32 to vector<16x192xf32>
    %83 = arith.addf %82, %81 : vector<16x192xf32>
    %84 = arith.divf %82, %83 : vector<16x192xf32>
    %85 = tpu.iota {dimensions = array<i32: 0>} : vector<16x192xi32>
    %c8_i32 = arith.constant 8 : i32
    %c0_i32 = arith.constant 0 : i32
    %86 = arith.cmpi eq, %c8_i32, %c0_i32 : i32
    %c1_i32 = arith.constant 1 : i32
    %87 = arith.select %86, %c1_i32, %c8_i32 : i32
    %88 = vector.broadcast %87 : i32 to vector<16x192xi32>
    %89 = arith.remsi %85, %88 : vector<16x192xi32>
    %c0_i32_25 = arith.constant 0 : i32
    %90 = vector.broadcast %c0_i32_25 : i32 to vector<16x192xi32>
    %91 = arith.cmpi ne, %89, %90 : vector<16x192xi32>
    %c0_i32_26 = arith.constant 0 : i32
    %92 = vector.broadcast %c0_i32_26 : i32 to vector<16x192xi32>
    %93 = arith.cmpi slt, %89, %92 : vector<16x192xi32>
    %c0_i32_27 = arith.constant 0 : i32
    %94 = arith.cmpi slt, %87, %c0_i32_27 : i32
    %95 = vector.broadcast %94 : i1 to vector<16x192xi1>
    %96 = vector.broadcast %95 : vector<16x192xi1> to vector<16x192xi1>
    %97 = arith.xori %93, %96 : vector<16x192xi1>
    %98 = arith.andi %97, %91 : vector<16x192xi1>
    %99 = vector.broadcast %87 : i32 to vector<16x192xi32>
    %100 = arith.addi %89, %99 : vector<16x192xi32>
    %101 = arith.select %98, %100, %89 : vector<16x192xi1>, vector<16x192xi32>
    %c0_i32_28 = arith.constant 0 : i32
    %102 = vector.broadcast %c0_i32_28 : i32 to vector<16x192xi32>
    %103 = arith.cmpi eq, %101, %102 : vector<16x192xi32>
    %104 = arith.mulf %76, %84 : vector<16x192xf32>
    %105 = arith.addf %1, %104 : vector<16x192xf32>
    %106 = arith.select %103, %1, %105 : vector<16x192xi1>, vector<16x192xf32>
    %c0_29 = arith.constant 0 : index
    %c0_30 = arith.constant 0 : index
    %107 = vector.load %arg10[%c0_29, %c0_30] : memref<16x192xf32, #tpu.memory_space<vmem>>, vector<16x192xf32>
    tpu.vector_store %arg10[%c0_29, %c0_30], %106 {strides = array<i32>} : memref<16x192xf32, #tpu.memory_space<vmem>>, vector<16x192xf32>,
    return
  }
  func.func @transform_0(%arg0: i32) -> (i32, i32) {
    %c0_i32 = arith.constant 0 : i32
    %c0_i32_0 = arith.constant 0 : i32
    return %arg0, %c0_i32 : i32, i32
  }
  func.func @transform_1(%arg0: i32) -> (i32, i32) {
    %c0_i32 = arith.constant 0 : i32
    %c0_i32_0 = arith.constant 0 : i32
    return %arg0, %c0_i32 : i32, i32
  }
  func.func @transform_2(%arg0: i32) -> (i32, i32) {
    %c0_i32 = arith.constant 0 : i32
    %c0_i32_0 = arith.constant 0 : i32
    %c0_i32_1 = arith.constant 0 : i32
    return %c0_i32, %c0_i32_0 : i32, i32
  }
  func.func @transform_3(%arg0: i32) -> (i32, i32) {
    %c0_i32 = arith.constant 0 : i32
    %c0_i32_0 = arith.constant 0 : i32
    %c0_i32_1 = arith.constant 0 : i32
    return %c0_i32, %c0_i32_0 : i32, i32
  }
  func.func @transform_4(%arg0: i32) -> (i32, i32) {
    %c0_i32 = arith.constant 0 : i32
    %c0_i32_0 = arith.constant 0 : i32
    %c0_i32_1 = arith.constant 0 : i32
    return %c0_i32, %c0_i32_0 : i32, i32
  }
  func.func @transform_5(%arg0: i32) -> (i32, i32) {
    %c0_i32 = arith.constant 0 : i32
    %c0_i32_0 = arith.constant 0 : i32
    %c0_i32_1 = arith.constant 0 : i32
    return %c0_i32, %c0_i32_0 : i32, i32
  }
  func.func @transform_6(%arg0: i32) -> (i32, i32) {
    %c0_i32 = arith.constant 0 : i32
    %c0_i32_0 = arith.constant 0 : i32
    %c0_i32_1 = arith.constant 0 : i32
    return %c0_i32, %c0_i32_0 : i32, i32
  }
  func.func @transform_7(%arg0: i32) -> (i32, i32) {
    %c0_i32 = arith.constant 0 : i32
    %c0_i32_0 = arith.constant 0 : i32
    %c0_i32_1 = arith.constant 0 : i32
    return %c0_i32, %c0_i32_0 : i32, i32
  }
  func.func @transform_8(%arg0: i32) -> (i32, i32) {
    %c0_i32 = arith.constant 0 : i32
    %c0_i32_0 = arith.constant 0 : i32
    %c0_i32_1 = arith.constant 0 : i32
    return %c0_i32, %c0_i32_0 : i32, i32
  }
  func.func @transform_9(%arg0: i32) -> (i32, i32) {
    %c0_i32 = arith.constant 0 : i32
    %c0_i32_0 = arith.constant 0 : i32
    return %arg0, %c0_i32 : i32, i32
  }
}

</mosaic_0001>

<llo_original>
// kernel: tpu_custom_call.1
$region0: #{tpu_custom_call.1}
  #allocation0 [shape = 'u32[]', space=smem, size = 0x4, offset = 0x4, fixed_abs, tag = 'smem constant byte address 0x4 - core index']
  #allocation1 [shape = 'u32[72,128]{1,0:T(1,128)}', space=vmem, size = 0x9000, scoped, tag = 'internal scratch']
  #allocation2 [shape = 'f32[1,1]{1,0:T(1,128)S(1)}', space=vmem, size = 0x200, scoped, tag = 'scoped memory for tpu_custom_call.1']
  %s0 = inlined_call_operand.hbm [shape: f32[16,128], index: 0, kind: input, shape index: {}]
  %s1 = inlined_call_operand.hbm [shape: f32[16,192], index: 1, kind: input, shape index: {}]
  %s2 = inlined_call_operand.hbm [shape: f32[128,128], index: 2, kind: input, shape index: {}]
  %s3 = inlined_call_operand.vmem [shape: f32[1,128], index: 3, kind: input, shape index: {}]
  %s4 = inlined_call_operand.vmem [shape: f32[1,128], index: 4, kind: input, shape index: {}]
  %s5 = inlined_call_operand.<no memory space> [shape: f32[1,1], index: 5, kind: input, shape index: {}]
  %s6 = inlined_call_operand.hbm [shape: f32[192,192], index: 6, kind: input, shape index: {}]
  %s7 = inlined_call_operand.hbm [shape: f32[32,32], index: 7, kind: input, shape index: {}]
  %s8 = inlined_call_operand.vmem [shape: f32[1,32], index: 8, kind: input, shape index: {}]
  %s9 = inlined_call_operand.hbm [shape: f32[16,192], index: 9, kind: output, shape index: {}]
  %s10 = sld [smem:[#allocation0]]
  $region66: #{tpu_custom_call.1} parent=0
    _
  %s12 = ssub.s32 1, %s10
  %s13 = scalar_select 0, %s12, %s10
  %v14 = vstv %s5
  %15 = vst [vmem:[#allocation2] sm:$0x1] %v14
  $region1: #{tpu_custom_call.1} parent=0
    #allocation3 [shape = 'u8[8192]{0}', space=vmem, size = 0x2000, scoped, tag = 'input window, operand 0, single buffered']
    #allocation4 [shape = 's32[1]{0}', space=sflag, size = 0x4, scoped, tag = 'scoped memory for tpu_custom_call.1']
    #allocation5 [shape = 's32[1]{0}', space=sflag, size = 0x4, scoped, tag = 'scoped memory for tpu_custom_call.1']
    #allocation6 [shape = 'u8[16384]{0}', space=vmem, size = 0x4000, scoped, tag = 'input window, operand 1, single buffered']
    #allocation7 [shape = 's32[1]{0}', space=sflag, size = 0x4, scoped, tag = 'scoped memory for tpu_custom_call.1']
    #allocation8 [shape = 'u8[65536]{0}', space=vmem, size = 0x10000, scoped, tag = 'input window, operand 2, single buffered']
    #allocation9 [shape = 'u8[196608]{0}', space=vmem, size = 0x30000, scoped, tag = 'input window, operand 6, single buffered']
    #allocation10 [shape = 's32[1]{0}', space=sflag, size = 0x4, scoped, tag = 'scoped memory for tpu_custom_call.1']
    #allocation11 [shape = 'u8[16384]{0}', space=vmem, size = 0x4000, scoped, tag = 'input window, operand 7, single buffered']
    #allocation12 [shape = 'u8[16384]{0}', space=vmem, size = 0x4000, scoped, tag = 'output window, operand 0, single buffered']
    %16 = vsyncpa [#allocation4], 0
    %17 = vsyncpa [#allocation7], 0
    %18 = vsyncpa [#allocation10], 0
    %19 = vsyncpa [#allocation5], 0
    // Predicated region
    $region2: #{tpu_custom_call.1} parent=1 // pred_check
      _
    $region3: #{tpu_custom_call.1} parent=1 // pred_check_branch
      %21 = sbr.rel (0) target = $region5
    $region4: #{tpu_custom_call.1} parent=1 // pred_region
      %23 = vsyncadd [#allocation4], 0
      %s24 = sshll.u32 %s0, 4
      %s25 = int_to_ptr.hbm [resolvable:$true] %s24
      %s26 = sshll.u32 [#allocation3], 4
      %s27 = int_to_ptr.vmem [resolvable:$true] %s26
      %32 = dma.hbm_to_vmem [thread:$0]  %s25, 256, %s27, [#allocation4], 128, 128, 8
    $region5: #{tpu_custom_call.1} parent=1 // pred_fallthru
      _
    // Predicated region
    $region6: #{tpu_custom_call.1} parent=1 // pred_check
      _
    $region7: #{tpu_custom_call.1} parent=1 // pred_check_branch
      %34 = sbr.rel (0) target = $region9
    $region8: #{tpu_custom_call.1} parent=1 // pred_region
      %36 = vsyncadd [#allocation7], 0
      %s37 = sshll.u32 %s1, 4
      %s38 = int_to_ptr.hbm [resolvable:$true] %s37
      %s39 = sshll.u32 [#allocation6], 4
      %s40 = int_to_ptr.vmem [resolvable:$true] %s39
      %45 = dma.hbm_to_vmem [thread:$0]  %s38, 512, %s40, [#allocation7], 256, 256, 16
    $region9: #{tpu_custom_call.1} parent=1 // pred_fallthru
      _
    // Predicated region
    $region10: #{tpu_custom_call.1} parent=1 // pred_check
      _
    $region11: #{tpu_custom_call.1} parent=1 // pred_check_branch
      %47 = sbr.rel (0) target = $region13
    $region12: #{tpu_custom_call.1} parent=1 // pred_region
      %49 = vsyncadd [#allocation7], 0
      %s50 = sshll.u32 %s2, 4
      %s51 = int_to_ptr.hbm [resolvable:$true] %s50
      %s52 = sshll.u32 [#allocation8], 4
      %s53 = int_to_ptr.vmem [resolvable:$true] %s52
      %58 = dma.hbm_to_vmem [thread:$0]  %s51, 2048, %s53, [#allocation7], 128, 128, 8
    $region13: #{tpu_custom_call.1} parent=1 // pred_fallthru
      _
    // Predicated region
    $region14: #{tpu_custom_call.1} parent=1 // pred_check
      _
    $region15: #{tpu_custom_call.1} parent=1 // pred_check_branch
      %60 = sbr.rel (0) target = $region17
    $region16: #{tpu_custom_call.1} parent=1 // pred_region
      _
    $region17: #{tpu_custom_call.1} parent=1 // pred_fallthru
      _
    // Predicated region
    $region18: #{tpu_custom_call.1} parent=1 // pred_check
      _
    $region19: #{tpu_custom_call.1} parent=1 // pred_check_branch
      %62 = sbr.rel (0) target = $region21
    $region20: #{tpu_custom_call.1} parent=1 // pred_region
      _
    $region21: #{tpu_custom_call.1} parent=1 // pred_fallthru
      _
    // Predicated region
    $region22: #{tpu_custom_call.1} parent=1 // pred_check
      _
    $region23: #{tpu_custom_call.1} parent=1 // pred_check_branch
      %64 = sbr.rel (0) target = $region25
    $region24: #{tpu_custom_call.1} parent=1 // pred_region
      _
    $region25: #{tpu_custom_call.1} parent=1 // pred_fallthru
      _
    // Predicated region
    $region26: #{tpu_custom_call.1} parent=1 // pred_check
      _
    $region27: #{tpu_custom_call.1} parent=1 // pred_check_branch
      %66 = sbr.rel (0) target = $region29
    $region28: #{tpu_custom_call.1} parent=1 // pred_region
      %68 = vsyncadd [#allocation10], 0
      %s69 = sshll.u32 %s6, 4
      %s70 = int_to_ptr.hbm [resolvable:$true] %s69
      %s71 = sshll.u32 [#allocation9], 4
      %s72 = int_to_ptr.vmem [resolvable:$true] %s71
      %77 = dma.hbm_to_vmem [thread:$0]  %s70, 6144, %s72, [#allocation10], 256, 256, 16
    $region29: #{tpu_custom_call.1} parent=1 // pred_fallthru
      _
    // Predicated region
    $region30: #{tpu_custom_call.1} parent=1 // pred_check
      _
    $region31: #{tpu_custom_call.1} parent=1 // pred_check_branch
      %79 = sbr.rel (0) target = $region33
    $region32: #{tpu_custom_call.1} parent=1 // pred_region
      %81 = vsyncadd [#allocation10], 0
      %s82 = sshll.u32 %s7, 4
      %s83 = int_to_ptr.hbm [resolvable:$true] %s82
      %s84 = sshll.u32 [#allocation11], 4
      %s85 = int_to_ptr.vmem [resolvable:$true] %s84
      %90 = dma.hbm_to_vmem [thread:$0]  %s83, 512, %s85, [#allocation10], 128, 128, 8
    $region33: #{tpu_custom_call.1} parent=1 // pred_fallthru
      _
    // Predicated region
    $region34: #{tpu_custom_call.1} parent=1 // pred_check
      _
    $region35: #{tpu_custom_call.1} parent=1 // pred_check_branch
      %92 = sbr.rel (0) target = $region37
    $region36: #{tpu_custom_call.1} parent=1 // pred_region
      _
    $region37: #{tpu_custom_call.1} parent=1 // pred_fallthru
      _
    // Predicated region
    $region38: #{tpu_custom_call.1} parent=1 // pred_check
      _
    $region39: #{tpu_custom_call.1} parent=1 // pred_check_branch
      %94 = sbr.rel (0) target = $region41
    $region40: #{tpu_custom_call.1} parent=1 // pred_region
      %96 = dma.done [#allocation4], 256
    $region41: #{tpu_custom_call.1} parent=1 // pred_fallthru
      _
    // Predicated region
    $region42: #{tpu_custom_call.1} parent=1 // pred_check
      _
    $region43: #{tpu_custom_call.1} parent=1 // pred_check_branch
      %98 = sbr.rel (0) target = $region45
    $region44: #{tpu_custom_call.1} parent=1 // pred_region
      %100 = dma.done [#allocation7], 512
    $region45: #{tpu_custom_call.1} parent=1 // pred_fallthru
      _
    // Predicated region
    $region46: #{tpu_custom_call.1} parent=1 // pred_check
      _
    $region47: #{tpu_custom_call.1} parent=1 // pred_check_branch
      %102 = sbr.rel (0) target = $region49
    $region48: #{tpu_custom_call.1} parent=1 // pred_region
      %104 = dma.done [#allocation7], 2048
    $region49: #{tpu_custom_call.1} parent=1 // pred_fallthru
      _
    // Predicated region
    $region50: #{tpu_custom_call.1} parent=1 // pred_check
      _
    $region51: #{tpu_custom_call.1} parent=1 // pred_check_branch
      %106 = sbr.rel (0) target = $region53
    $region52: #{tpu_custom_call.1} parent=1 // pred_region
      %108 = dma.done [#allocation10], 6144
    $region53: #{tpu_custom_call.1} parent=1 // pred_fallthru
      _
    // Predicated region
    $region54: #{tpu_custom_call.1} parent=1 // pred_check
      _
    $region55: #{tpu_custom_call.1} parent=1 // pred_check_branch
      %110 = sbr.rel (0) target = $region57
    $region56: #{tpu_custom_call.1} parent=1 // pred_region
      %112 = dma.done [#allocation10], 512
    $region57: #{tpu_custom_call.1} parent=1 // pred_fallthru
      _
    %v113 = vld [vmem:[#allocation3] sm:$0xff]
    %v114 = vld [vmem:[#allocation3 + $0x8] sm:$0xff]
    %v115 = vld [vmem:[#allocation6] sm:$0xff]
    %v116 = vld [vmem:[#allocation6 + $0x8] sm:$0xff]
    %v117 = vld [vmem:[#allocation6 + $0x10] sm:$0xff]
    %v118 = vld [vmem:[#allocation6 + $0x18] sm:$0xff]
    %v119 = vld [vmem:[#allocation8] sm:$0xff]
    %v120 = vld [vmem:[#allocation8 + $0x8] sm:$0xff]
    %v121 = vld [vmem:[#allocation8 + $0x10] sm:$0xff]
    %v122 = vld [vmem:[#allocation8 + $0x18] sm:$0xff]
    %v123 = vld [vmem:[#allocation8 + $0x20] sm:$0xff]
    %v124 = vld [vmem:[#allocation8 + $0x28] sm:$0xff]
    %v125 = vld [vmem:[#allocation8 + $0x30] sm:$0xff]
    %v126 = vld [vmem:[#allocation8 + $0x38] sm:$0xff]
    %v127 = vld [vmem:[#allocation8 + $0x40] sm:$0xff]
    %v128 = vld [vmem:[#allocation8 + $0x48] sm:$0xff]
    %v129 = vld [vmem:[#allocation8 + $0x50] sm:$0xff]
    %v130 = vld [vmem:[#allocation8 + $0x58] sm:$0xff]
    %v131 = vld [vmem:[#allocation8 + $0x60] sm:$0xff]
    %v132 = vld [vmem:[#allocation8 + $0x68] sm:$0xff]
    %v133 = vld [vmem:[#allocation8 + $0x70] sm:$0xff]
    %v134 = vld [vmem:[#allocation8 + $0x78] sm:$0xff]
    %v135 = vld [vmem:[%s3] sm:$0x1]
    %v137 = vperm.slane %v135, 0
    %v139 = vand.u32 %v134, 4294901760
    %140 = vmatpush.msra.mxu0 %v139
    %v141 = vand.u32 %v133, 4294901760
    %142 = vmatpush.msra.mxu0 %v141
    %v143 = vand.u32 %v132, 4294901760
    %144 = vmatpush.msra.mxu0 %v143
    %v145 = vand.u32 %v131, 4294901760
    %146 = vmatpush.msra.mxu0 %v145
    %v147 = vand.u32 %v130, 4294901760
    %148 = vmatpush.msra.mxu0 %v147
    %v149 = vand.u32 %v129, 4294901760
    %150 = vmatpush.msra.mxu0 %v149
    %v151 = vand.u32 %v128, 4294901760
    %152 = vmatpush.msra.mxu0 %v151
    %v153 = vand.u32 %v127, 4294901760
    %154 = vmatpush.msra.mxu0 %v153
    %v155 = vand.u32 %v126, 4294901760
    %156 = vmatpush.msra.mxu0 %v155
    %v157 = vand.u32 %v125, 4294901760
    %158 = vmatpush.msra.mxu0 %v157
    %v159 = vand.u32 %v124, 4294901760
    %160 = vmatpush.msra.mxu0 %v159
    %v161 = vand.u32 %v123, 4294901760
    %162 = vmatpush.msra.mxu0 %v161
    %v163 = vand.u32 %v122, 4294901760
    %164 = vmatpush.msra.mxu0 %v163
    %v165 = vand.u32 %v121, 4294901760
    %166 = vmatpush.msra.mxu0 %v165
    %v167 = vand.u32 %v120, 4294901760
    %168 = vmatpush.msra.mxu0 %v167
    %v169 = vand.u32 %v119, 4294901760
    %170 = vmatpush.msra.mxu0 %v169
    %v171 = vand.u32 %v113, 4294901760
    %v172 = vsub.f32 %v113, %v171
    %v173 = vand.u32 %v172, 4294901760
    %v174 = vsub.f32 %v172, %v173
    %v175 = vand.u32 %v174, 4294901760
    %176 = vmatmul.f32.gmra.mxu0 %v175
    %v177 = vpop.f32.mrf.mxu0
    %v178 = vadd.f32 %v137, %v177
    %v179 = vand.u32 %v114, 4294901760
    %v180 = vsub.f32 %v114, %v179
    %v181 = vand.u32 %v180, 4294901760
    %v182 = vsub.f32 %v180, %v181
    %v183 = vand.u32 %v182, 4294901760
    %184 = vmatmul.f32.gmra.mxu0 %v183
    %v185 = vpop.f32.mrf.mxu0
    %v186 = vadd.f32 %v137, %v185
    %187 = vdwg.mxu0
    %v188 = vand.u32 %v134, 4294901760
    %v189 = vsub.f32 %v134, %v188
    %v190 = vand.u32 %v189, 4294901760
    %v191 = vsub.f32 %v189, %v190
    %v192 = vand.u32 %v191, 4294901760
    %193 = vmatpush.msra.mxu0 %v192
    %v194 = vand.u32 %v133, 4294901760
    %v195 = vsub.f32 %v133, %v194
    %v196 = vand.u32 %v195, 4294901760
    %v197 = vsub.f32 %v195, %v196
    %v198 = vand.u32 %v197, 4294901760
    %199 = vmatpush.msra.mxu0 %v198
    %v200 = vand.u32 %v132, 4294901760
    %v201 = vsub.f32 %v132, %v200
    %v202 = vand.u32 %v201, 4294901760
    %v203 = vsub.f32 %v201, %v202
    %v204 = vand.u32 %v203, 4294901760
    %205 = vmatpush.msra.mxu0 %v204
    %v206 = vand.u32 %v131, 4294901760
    %v207 = vsub.f32 %v131, %v206
    %v208 = vand.u32 %v207, 4294901760
    %v209 = vsub.f32 %v207, %v208
    %v210 = vand.u32 %v209, 4294901760
    %211 = vmatpush.msra.mxu0 %v210
    %v212 = vand.u32 %v130, 4294901760
    %v213 = vsub.f32 %v130, %v212
    %v214 = vand.u32 %v213, 4294901760
    %v215 = vsub.f32 %v213, %v214
    %v216 = vand.u32 %v215, 4294901760
    %217 = vmatpush.msra.mxu0 %v216
    %v218 = vand.u32 %v129, 4294901760
    %v219 = vsub.f32 %v129, %v218
    %v220 = vand.u32 %v219, 4294901760
    %v221 = vsub.f32 %v219, %v220
    %v222 = vand.u32 %v221, 4294901760
    %223 = vmatpush.msra.mxu0 %v222
    %v224 = vand.u32 %v128, 4294901760
    %v225 = vsub.f32 %v128, %v224
    %v226 = vand.u32 %v225, 4294901760
    %v227 = vsub.f32 %v225, %v226
    %v228 = vand.u32 %v227, 4294901760
    %229 = vmatpush.msra.mxu0 %v228
    %v230 = vand.u32 %v127, 4294901760
    %v231 = vsub.f32 %v127, %v230
    %v232 = vand.u32 %v231, 4294901760
    %v233 = vsub.f32 %v231, %v232
    %v234 = vand.u32 %v233, 4294901760
    %235 = vmatpush.msra.mxu0 %v234
    %v236 = vand.u32 %v126, 4294901760
    %v237 = vsub.f32 %v126, %v236
    %v238 = vand.u32 %v237, 4294901760
    %v239 = vsub.f32 %v237, %v238
    %v240 = vand.u32 %v239, 4294901760
    %241 = vmatpush.msra.mxu0 %v240
    %v242 = vand.u32 %v125, 4294901760
    %v243 = vsub.f32 %v125, %v242
    %v244 = vand.u32 %v243, 4294901760
    %v245 = vsub.f32 %v243, %v244
    %v246 = vand.u32 %v245, 4294901760
    %247 = vmatpush.msra.mxu0 %v246
    %v248 = vand.u32 %v124, 4294901760
    %v249 = vsub.f32 %v124, %v248
    %v250 = vand.u32 %v249, 4294901760
    %v251 = vsub.f32 %v249, %v250
    %v252 = vand.u32 %v251, 4294901760
    %253 = vmatpush.msra.mxu0 %v252
    %v254 = vand.u32 %v123, 4294901760
    %v255 = vsub.f32 %v123, %v254
    %v256 = vand.u32 %v255, 4294901760
    %v257 = vsub.f32 %v255, %v256
    %v258 = vand.u32 %v257, 4294901760
    %259 = vmatpush.msra.mxu0 %v258
    %v260 = vand.u32 %v122, 4294901760
    %v261 = vsub.f32 %v122, %v260
    %v262 = vand.u32 %v261, 4294901760
    %v263 = vsub.f32 %v261, %v262
    %v264 = vand.u32 %v263, 4294901760
    %265 = vmatpush.msra.mxu0 %v264
    %v266 = vand.u32 %v121, 4294901760
    %v267 = vsub.f32 %v121, %v266
    %v268 = vand.u32 %v267, 4294901760
    %v269 = vsub.f32 %v267, %v268
    %v270 = vand.u32 %v269, 4294901760
    %271 = vmatpush.msra.mxu0 %v270
    %v272 = vand.u32 %v120, 4294901760
    %v273 = vsub.f32 %v120, %v272
    %v274 = vand.u32 %v273, 4294901760
    %v275 = vsub.f32 %v273, %v274
    %v276 = vand.u32 %v275, 4294901760
    %277 = vmatpush.msra.mxu0 %v276
    %v278 = vand.u32 %v119, 4294901760
    %v279 = vsub.f32 %v119, %v278
    %v280 = vand.u32 %v279, 4294901760
    %v281 = vsub.f32 %v279, %v280
    %v282 = vand.u32 %v281, 4294901760
    %283 = vmatpush.msra.mxu0 %v282
    %v284 = vand.u32 %v113, 4294901760
    %285 = vmatmul.f32.gmra.mxu0 %v284
    %v286 = vpop.f32.mrf.mxu0
    %v287 = vadd.f32 %v178, %v286
    %v288 = vand.u32 %v114, 4294901760
    %289 = vmatmul.f32.gmra.mxu0 %v288
    %v290 = vpop.f32.mrf.mxu0
    %v291 = vadd.f32 %v186, %v290
    %292 = vdwg.mxu0
    %v293 = vand.u32 %v134, 4294901760
    %v294 = vsub.f32 %v134, %v293
    %295 = vmatpush.msra.mxu0 %v294
    %v296 = vand.u32 %v133, 4294901760
    %v297 = vsub.f32 %v133, %v296
    %298 = vmatpush.msra.mxu0 %v297
    %v299 = vand.u32 %v132, 4294901760
    %v300 = vsub.f32 %v132, %v299
    %301 = vmatpush.msra.mxu0 %v300
    %v302 = vand.u32 %v131, 4294901760
    %v303 = vsub.f32 %v131, %v302
    %304 = vmatpush.msra.mxu0 %v303
    %v305 = vand.u32 %v130, 4294901760
    %v306 = vsub.f32 %v130, %v305
    %307 = vmatpush.msra.mxu0 %v306
    %v308 = vand.u32 %v129, 4294901760
    %v309 = vsub.f32 %v129, %v308
    %310 = vmatpush.msra.mxu0 %v309
    %v311 = vand.u32 %v128, 4294901760
    %v312 = vsub.f32 %v128, %v311
    %313 = vmatpush.msra.mxu0 %v312
    %v314 = vand.u32 %v127, 4294901760
    %v315 = vsub.f32 %v127, %v314
    %316 = vmatpush.msra.mxu0 %v315
    %v317 = vand.u32 %v126, 4294901760
    %v318 = vsub.f32 %v126, %v317
    %319 = vmatpush.msra.mxu0 %v318
    %v320 = vand.u32 %v125, 4294901760
    %v321 = vsub.f32 %v125, %v320
    %322 = vmatpush.msra.mxu0 %v321
    %v323 = vand.u32 %v124, 4294901760
    %v324 = vsub.f32 %v124, %v323
    %325 = vmatpush.msra.mxu0 %v324
    %v326 = vand.u32 %v123, 4294901760
    %v327 = vsub.f32 %v123, %v326
    %328 = vmatpush.msra.mxu0 %v327
    %v329 = vand.u32 %v122, 4294901760
    %v330 = vsub.f32 %v122, %v329
    %331 = vmatpush.msra.mxu0 %v330
    %v332 = vand.u32 %v121, 4294901760
    %v333 = vsub.f32 %v121, %v332
    %334 = vmatpush.msra.mxu0 %v333
    %v335 = vand.u32 %v120, 4294901760
    %v336 = vsub.f32 %v120, %v335
    %337 = vmatpush.msra.mxu0 %v336
    %v338 = vand.u32 %v119, 4294901760
    %v339 = vsub.f32 %v119, %v338
    %340 = vmatpush.msra.mxu0 %v339
    %v341 = vand.u32 %v113, 4294901760
    %v342 = vsub.f32 %v113, %v341
    %343 = vmatmul.f32.gmra.mxu0 %v342
    %v344 = vpop.f32.mrf.mxu0
    %v345 = vadd.f32 %v287, %v344
    %v346 = vand.u32 %v114, 4294901760
    %v347 = vsub.f32 %v114, %v346
    %348 = vmatmul.f32.gmra.mxu0 %v347
    %v349 = vpop.f32.mrf.mxu0
    %v350 = vadd.f32 %v291, %v349
    %351 = vdwg.mxu0
    %v352 = vand.u32 %v134, 4294901760
    %353 = vmatpush.msra.mxu0 %v352
    %v354 = vand.u32 %v133, 4294901760
    %355 = vmatpush.msra.mxu0 %v354
    %v356 = vand.u32 %v132, 4294901760
    %357 = vmatpush.msra.mxu0 %v356
    %v358 = vand.u32 %v131, 4294901760
    %359 = vmatpush.msra.mxu0 %v358
    %v360 = vand.u32 %v130, 4294901760
    %361 = vmatpush.msra.mxu0 %v360
    %v362 = vand.u32 %v129, 4294901760
    %363 = vmatpush.msra.mxu0 %v362
    %v364 = vand.u32 %v128, 4294901760
    %365 = vmatpush.msra.mxu0 %v364
    %v366 = vand.u32 %v127, 4294901760
    %367 = vmatpush.msra.mxu0 %v366
    %v368 = vand.u32 %v126, 4294901760
    %369 = vmatpush.msra.mxu0 %v368
    %v370 = vand.u32 %v125, 4294901760
    %371 = vmatpush.msra.mxu0 %v370
    %v372 = vand.u32 %v124, 4294901760
    %373 = vmatpush.msra.mxu0 %v372
    %v374 = vand.u32 %v123, 4294901760
    %375 = vmatpush.msra.mxu0 %v374
    %v376 = vand.u32 %v122, 4294901760
    %377 = vmatpush.msra.mxu0 %v376
    %v378 = vand.u32 %v121, 4294901760
    %379 = vmatpush.msra.mxu0 %v378
    %v380 = vand.u32 %v120, 4294901760
    %381 = vmatpush.msra.mxu0 %v380
    %v382 = vand.u32 %v119, 4294901760
    %383 = vmatpush.msra.mxu0 %v382
    %v384 = vand.u32 %v113, 4294901760
    %v385 = vsub.f32 %v113, %v384
    %v386 = vand.u32 %v385, 4294901760
    %387 = vmatmul.f32.gmra.mxu0 %v386
    %v388 = vpop.f32.mrf.mxu0
    %v389 = vadd.f32 %v345, %v388
    %v390 = vand.u32 %v114, 4294901760
    %v391 = vsub.f32 %v114, %v390
    %v392 = vand.u32 %v391, 4294901760
    %393 = vmatmul.f32.gmra.mxu0 %v392
    %v394 = vpop.f32.mrf.mxu0
    %v395 = vadd.f32 %v350, %v394
    %396 = vdwg.mxu0
    %v397 = vand.u32 %v134, 4294901760
    %v398 = vsub.f32 %v134, %v397
    %v399 = vand.u32 %v398, 4294901760
    %400 = vmatpush.msra.mxu0 %v399
    %v401 = vand.u32 %v133, 4294901760
    %v402 = vsub.f32 %v133, %v401
    %v403 = vand.u32 %v402, 4294901760
    %404 = vmatpush.msra.mxu0 %v403
    %v405 = vand.u32 %v132, 4294901760
    %v406 = vsub.f32 %v132, %v405
    %v407 = vand.u32 %v406, 4294901760
    %408 = vmatpush.msra.mxu0 %v407
    %v409 = vand.u32 %v131, 4294901760
    %v410 = vsub.f32 %v131, %v409
    %v411 = vand.u32 %v410, 4294901760
    %412 = vmatpush.msra.mxu0 %v411
    %v413 = vand.u32 %v130, 4294901760
    %v414 = vsub.f32 %v130, %v413
    %v415 = vand.u32 %v414, 4294901760
    %416 = vmatpush.msra.mxu0 %v415
    %v417 = vand.u32 %v129, 4294901760
    %v418 = vsub.f32 %v129, %v417
    %v419 = vand.u32 %v418, 4294901760
    %420 = vmatpush.msra.mxu0 %v419
    %v421 = vand.u32 %v128, 4294901760
    %v422 = vsub.f32 %v128, %v421
    %v423 = vand.u32 %v422, 4294901760
    %424 = vmatpush.msra.mxu0 %v423
    %v425 = vand.u32 %v127, 4294901760
    %v426 = vsub.f32 %v127, %v425
    %v427 = vand.u32 %v426, 4294901760
    %428 = vmatpush.msra.mxu0 %v427
    %v429 = vand.u32 %v126, 4294901760
    %v430 = vsub.f32 %v126, %v429
    %v431 = vand.u32 %v430, 4294901760
    %432 = vmatpush.msra.mxu0 %v431
    %v433 = vand.u32 %v125, 4294901760
    %v434 = vsub.f32 %v125, %v433
    %v435 = vand.u32 %v434, 4294901760
    %436 = vmatpush.msra.mxu0 %v435
    %v437 = vand.u32 %v124, 4294901760
    %v438 = vsub.f32 %v124, %v437
    %v439 = vand.u32 %v438, 4294901760
    %440 = vmatpush.msra.mxu0 %v439
    %v441 = vand.u32 %v123, 4294901760
    %v442 = vsub.f32 %v123, %v441
    %v443 = vand.u32 %v442, 4294901760
    %444 = vmatpush.msra.mxu0 %v443
    %v445 = vand.u32 %v122, 4294901760
    %v446 = vsub.f32 %v122, %v445
    %v447 = vand.u32 %v446, 4294901760
    %448 = vmatpush.msra.mxu0 %v447
    %v449 = vand.u32 %v121, 4294901760
    %v450 = vsub.f32 %v121, %v449
    %v451 = vand.u32 %v450, 4294901760
    %452 = vmatpush.msra.mxu0 %v451
    %v453 = vand.u32 %v120, 4294901760
    %v454 = vsub.f32 %v120, %v453
    %v455 = vand.u32 %v454, 4294901760
    %456 = vmatpush.msra.mxu0 %v455
    %v457 = vand.u32 %v119, 4294901760
    %v458 = vsub.f32 %v119, %v457
    %v459 = vand.u32 %v458, 4294901760
    %460 = vmatpush.msra.mxu0 %v459
    %v461 = vand.u32 %v113, 4294901760
    %462 = vmatmul.f32.gmra.mxu0 %v461
    %v463 = vpop.f32.mrf.mxu0
    %v464 = vadd.f32 %v389, %v463
    %v465 = vand.u32 %v114, 4294901760
    %466 = vmatmul.f32.gmra.mxu0 %v465
    %v467 = vpop.f32.mrf.mxu0
    %v468 = vadd.f32 %v395, %v467
    %469 = vdwg.mxu0
    %v470 = vand.u32 %v134, 4294901760
    %471 = vmatpush.msra.mxu0 %v470
    %v472 = vand.u32 %v133, 4294901760
    %473 = vmatpush.msra.mxu0 %v472
    %v474 = vand.u32 %v132, 4294901760
    %475 = vmatpush.msra.mxu0 %v474
    %v476 = vand.u32 %v131, 4294901760
    %477 = vmatpush.msra.mxu0 %v476
    %v478 = vand.u32 %v130, 4294901760
    %479 = vmatpush.msra.mxu0 %v478
    %v480 = vand.u32 %v129, 4294901760
    %481 = vmatpush.msra.mxu0 %v480
    %v482 = vand.u32 %v128, 4294901760
    %483 = vmatpush.msra.mxu0 %v482
    %v484 = vand.u32 %v127, 4294901760
    %485 = vmatpush.msra.mxu0 %v484
    %v486 = vand.u32 %v126, 4294901760
    %487 = vmatpush.msra.mxu0 %v486
    %v488 = vand.u32 %v125, 4294901760
    %489 = vmatpush.msra.mxu0 %v488
    %v490 = vand.u32 %v124, 4294901760
    %491 = vmatpush.msra.mxu0 %v490
    %v492 = vand.u32 %v123, 4294901760
    %493 = vmatpush.msra.mxu0 %v492
    %v494 = vand.u32 %v122, 4294901760
    %495 = vmatpush.msra.mxu0 %v494
    %v496 = vand.u32 %v121, 4294901760
    %497 = vmatpush.msra.mxu0 %v496
    %v498 = vand.u32 %v120, 4294901760
    %499 = vmatpush.msra.mxu0 %v498
    %v500 = vand.u32 %v119, 4294901760
    %501 = vmatpush.msra.mxu0 %v500
    %v502 = vand.u32 %v113, 4294901760
    %503 = vmatmul.f32.gmra.mxu0 %v502
    %v504 = vpop.f32.mrf.mxu0
    %v505 = vadd.f32 %v464, %v504
    %v506 = vand.u32 %v114, 4294901760
    %507 = vmatmul.f32.gmra.mxu0 %v506
    %v508 = vpop.f32.mrf.mxu0
    %v509 = vadd.f32 %v468, %v508
    %510 = vdwg.mxu0
    %v511 = vtanh.pop %v505
    %v512 = vtanh.pop %v509
    %v513 = vld [vmem:[%s4] sm:$0x1]
    %v515 = vperm.slane %v513, 0
    %v517 = vmul.f32 %v511, %v515
    %v518 = vmul.f32 %v512, %v515
    %v519 = vld [vmem:[#allocation2] sm:$0x1]
    %vm520 = vcmask 261120
    %v521 = vsel %vm520, %v517, 0.0
    %522 = vadd.xlane.f32.xlu0 %v521
    %v523 = vpop.xlane.xlu0 %522
    %v524 = vsel %vm520, %v518, 0.0
    %525 = vadd.xlane.f32.xlu0 %v524
    %v526 = vpop.xlane.xlu0 %525
    %v528 = vperm.slane %v519, 0
    %v530 = vadd.f32 %v523, %v528
    %v531 = vadd.f32 %v526, %v528
    %534 = vrot.lane.b32.xlu0 %v517, 96
    %v535 = vpop.permute.xlu0 %534
    %536 = vrot.lane.b32.xlu0 %v518, 96
    %v537 = vpop.permute.xlu0 %536
    %v540 = vsel %vm520, %v535, 0.0
    %541 = vadd.xlane.f32.xlu0 %v540
    %v542 = vpop.xlane.xlu0 %541
    %v543 = vsel %vm520, %v537, 0.0
    %544 = vadd.xlane.f32.xlu0 %v543
    %v545 = vpop.xlane.xlu0 %544
    %v546 = vadd.f32 %v542, %v528
    %v547 = vadd.f32 %v545, %v528
    %548 = vrot.lane.b32.xlu0 %v517, 64
    %v549 = vpop.permute.xlu0 %548
    %550 = vrot.lane.b32.xlu0 %v518, 64
    %v551 = vpop.permute.xlu0 %550
    %v554 = vsel %vm520, %v549, 0.0
    %555 = vadd.xlane.f32.xlu0 %v554
    %v556 = vpop.xlane.xlu0 %555
    %v557 = vsel %vm520, %v551, 0.0
    %558 = vadd.xlane.f32.xlu0 %v557
    %v559 = vpop.xlane.xlu0 %558
    %v560 = vadd.f32 %v556, %v528
    %v561 = vadd.f32 %v559, %v528
    %562 = vrot.lane.b32.xlu0 %v517, 32
    %v563 = vpop.permute.xlu0 %562
    %564 = vrot.lane.b32.xlu0 %v518, 32
    %v565 = vpop.permute.xlu0 %564
    %v568 = vsel %vm520, %v563, 0.0
    %569 = vadd.xlane.f32.xlu0 %v568
    %v570 = vpop.xlane.xlu0 %569
    %v571 = vsel %vm520, %v565, 0.0
    %572 = vadd.xlane.f32.xlu0 %v571
    %v573 = vpop.xlane.xlu0 %572
    %v574 = vadd.f32 %v570, %v528
    %v575 = vadd.f32 %v573, %v528
    %v576 = vmax.f32 %v530, %v546
    %v577 = vmax.f32 %v531, %v547
    %v578 = vmax.f32 %v576, %v560
    %v579 = vmax.f32 %v577, %v561
    %v580 = vmax.f32 %v578, %v574
    %v581 = vmax.f32 %v579, %v575
    %v582 = vsub.f32 %v530, %v580
    %v583 = vsub.f32 %v531, %v581
    %v584 = vmul.f32 %v582, 1.442695
    %v585 = vpow.pop %v584
    %v586 = vmul.f32 %v583, 1.442695
    %v587 = vpow.pop %v586
    %v588 = vsub.f32 %v546, %v580
    %v589 = vsub.f32 %v547, %v581
    %v590 = vmul.f32 %v588, 1.442695
    %v591 = vpow.pop %v590
    %v592 = vmul.f32 %v589, 1.442695
    %v593 = vpow.pop %v592
    %v594 = vsub.f32 %v560, %v580
    %v595 = vsub.f32 %v561, %v581
    %v596 = vmul.f32 %v594, 1.442695
    %v597 = vpow.pop %v596
    %v598 = vmul.f32 %v595, 1.442695
    %v599 = vpow.pop %v598
    %v600 = vsub.f32 %v574, %v580
    %v601 = vsub.f32 %v575, %v581
    %v602 = vmul.f32 %v600, 1.442695
    %v603 = vpow.pop %v602
    %v604 = vmul.f32 %v601, 1.442695
    %v605 = vpow.pop %v604
    %v606 = vadd.f32 %v585, %v591
    %v607 = vadd.f32 %v587, %v593
    %v608 = vadd.f32 %v606, %v597
    %v609 = vadd.f32 %v607, %v599
    %v610 = vadd.f32 %v608, %v603
    %v611 = vadd.f32 %v609, %v605
    %v612 = vrcp.pop %v610
    %v613 = vmul.f32 %v610, %v612
    %v614 = vsub.f32 1.0, %v613
    %v615 = vmul.f32 %v612, %v614
    %v616 = vadd.f32 %v612, %v615
    %vm617 = vweird.f32 %v610
    %vm618 = vweird.f32 %v612
    %vm619 = vmor %vm617, %vm618
    %v620 = vsel %vm619, %v612, %v616
    %v621 = vand.u32 2147483647, %v610
    %vm622 = vcmp.eq.f32.partialorder %v621, 8.507059e+37
    %v623 = vand.u32 %v610, 2147483648
    %v624 = vor.u32 1.1754944e-38, %v623
    %v625 = vsel %vm622, %v624, %v620
    %v626 = vmul.f32 1.0, %v625
    %v627 = vrcp.pop %v611
    %v628 = vmul.f32 %v611, %v627
    %v629 = vsub.f32 1.0, %v628
    %v630 = vmul.f32 %v627, %v629
    %v631 = vadd.f32 %v627, %v630
    %vm632 = vweird.f32 %v611
    %vm633 = vweird.f32 %v627
    %vm634 = vmor %vm632, %vm633
    %v635 = vsel %vm634, %v627, %v631
    %v636 = vand.u32 2147483647, %v611
    %vm637 = vcmp.eq.f32.partialorder %v636, 8.507059e+37
    %v638 = vand.u32 %v611, 2147483648
    %v639 = vor.u32 1.1754944e-38, %v638
    %v640 = vsel %vm637, %v639, %v635
    %v641 = vmul.f32 1.0, %v640
    %v642 = vmul.f32 %v585, %v626
    %v643 = vmul.f32 %v587, %v641
    %645 = vset.pattern.permute.xlu0 0
    %646 = vperm.xlu0 %645, %v642
    %v647 = vpop.permute.xlu0 %646
    %650 = vset.pattern.permute.xlu0 0
    %651 = vperm.xlu0 %650, %v643
    %v652 = vpop.permute.xlu0 %651
    %v654 = vmul.f32 %v647, %v113
    %v655 = vmul.f32 %v652, %v114
    %v656 = vmul.f32 %v591, %v626
    %v657 = vmul.f32 %v593, %v641
    %659 = vset.pattern.permute.xlu0 0
    %660 = vperm.xlu0 %659, %v656
    %v661 = vpop.permute.xlu0 %660
    %664 = vset.pattern.permute.xlu0 0
    %665 = vperm.xlu0 %664, %v657
    %v666 = vpop.permute.xlu0 %665
    %v668 = vmul.f32 %v661, %v113
    %v669 = vmul.f32 %v666, %v114
    %672 = vrot.lane.b32.xlu0 %v668, 96
    %v673 = vpop.permute.xlu0 %672
    %674 = vrot.lane.b32.xlu0 %v669, 96
    %v675 = vpop.permute.xlu0 %674
    %v678 = vadd.f32 %v654, %v673
    %v679 = vadd.f32 %v655, %v675
    %v680 = vmul.f32 %v597, %v626
    %v681 = vmul.f32 %v599, %v641
    %683 = vset.pattern.permute.xlu0 0
    %684 = vperm.xlu0 %683, %v680
    %v685 = vpop.permute.xlu0 %684
    %688 = vset.pattern.permute.xlu0 0
    %689 = vperm.xlu0 %688, %v681
    %v690 = vpop.permute.xlu0 %689
    %v692 = vmul.f32 %v685, %v113
    %v693 = vmul.f32 %v690, %v114
    %696 = vrot.lane.b32.xlu0 %v692, 64
    %v697 = vpop.permute.xlu0 %696
    %698 = vrot.lane.b32.xlu0 %v693, 64
    %v699 = vpop.permute.xlu0 %698
    %v702 = vadd.f32 %v678, %v697
    %v703 = vadd.f32 %v679, %v699
    %v704 = vmul.f32 %v603, %v626
    %v705 = vmul.f32 %v605, %v641
    %707 = vset.pattern.permute.xlu0 0
    %708 = vperm.xlu0 %707, %v704
    %v709 = vpop.permute.xlu0 %708
    %712 = vset.pattern.permute.xlu0 0
    %713 = vperm.xlu0 %712, %v705
    %v714 = vpop.permute.xlu0 %713
    %v716 = vmul.f32 %v709, %v113
    %v717 = vmul.f32 %v714, %v114
    %720 = vrot.lane.b32.xlu0 %v716, 32
    %v721 = vpop.permute.xlu0 %720
    %722 = vrot.lane.b32.xlu0 %v717, 32
    %v723 = vpop.permute.xlu0 %722
    %v726 = vadd.f32 %v702, %v721
    %v727 = vadd.f32 %v703, %v723
    %v729 = vrot.slane %v727, 7
    %vm732 = vcmask 1040384
    %v733 = vrot.slane %v726, 7
    %v734 = vsel %vm732, %v733, %v729
    %v737 = vsel %vm732, %v729, %v733
    %v738 = vld [vmem:[#allocation11] sm:$0xff]
    %v739 = vld [vmem:[#allocation11 + $0x8] sm:$0xff]
    %v740 = vld [vmem:[#allocation11 + $0x10] sm:$0xff]
    %v741 = vld [vmem:[#allocation11 + $0x18] sm:$0xff]
    %v742 = vld [vmem:[%s8] sm:$0x1]
    %v744 = vperm.slane %v742, 0
    %v747 = vsel %vm520, %v737, 0
    %v749 = vsel %vm520, %v734, 0
    %751 = vmatpush.msra.mxu0 0.0
    %752 = vmatpush.msra.mxu0 0.0
    %753 = vmatpush.msra.mxu0 0.0
    %754 = vmatpush.msra.mxu0 0.0
    %755 = vmatpush.msra.mxu0 0.0
    %756 = vmatpush.msra.mxu0 0.0
    %757 = vmatpush.msra.mxu0 0.0
    %758 = vmatpush.msra.mxu0 0.0
    %759 = vmatpush.msra.mxu0 0.0
    %760 = vmatpush.msra.mxu0 0.0
    %761 = vmatpush.msra.mxu0 0.0
    %762 = vmatpush.msra.mxu0 0.0
    %v763 = vand.u32 %v741, 4294901760
    %764 = vmatpush.msra.mxu0 %v763
    %v765 = vand.u32 %v740, 4294901760
    %766 = vmatpush.msra.mxu0 %v765
    %v767 = vand.u32 %v739, 4294901760
    %768 = vmatpush.msra.mxu0 %v767
    %v769 = vand.u32 %v738, 4294901760
    %770 = vmatpush.msra.mxu0 %v769
    %v771 = vand.u32 %v747, 4294901760
    %v772 = vsub.f32 %v747, %v771
    %v773 = vand.u32 %v772, 4294901760
    %v774 = vsub.f32 %v772, %v773
    %v775 = vand.u32 %v774, 4294901760
    %776 = vmatmul.f32.gmra.mxu0 %v775
    %v777 = vpop.f32.mrf.mxu0
    %v778 = vadd.f32 %v744, %v777
    %v779 = vand.u32 %v749, 4294901760
    %v780 = vsub.f32 %v749, %v779
    %v781 = vand.u32 %v780, 4294901760
    %v782 = vsub.f32 %v780, %v781
    %v783 = vand.u32 %v782, 4294901760
    %784 = vmatmul.f32.gmra.mxu0 %v783
    %v785 = vpop.f32.mrf.mxu0
    %v786 = vadd.f32 %v744, %v785
    %787 = vdwg.mxu0
    %788 = vmatpush.msra.mxu0 0.0
    %789 = vmatpush.msra.mxu0 0.0
    %790 = vmatpush.msra.mxu0 0.0
    %791 = vmatpush.msra.mxu0 0.0
    %792 = vmatpush.msra.mxu0 0.0
    %793 = vmatpush.msra.mxu0 0.0
    %794 = vmatpush.msra.mxu0 0.0
    %795 = vmatpush.msra.mxu0 0.0
    %796 = vmatpush.msra.mxu0 0.0
    %797 = vmatpush.msra.mxu0 0.0
    %798 = vmatpush.msra.mxu0 0.0
    %799 = vmatpush.msra.mxu0 0.0
    %v800 = vand.u32 %v741, 4294901760
    %v801 = vsub.f32 %v741, %v800
    %v802 = vand.u32 %v801, 4294901760
    %v803 = vsub.f32 %v801, %v802
    %v804 = vand.u32 %v803, 4294901760
    %805 = vmatpush.msra.mxu0 %v804
    %v806 = vand.u32 %v740, 4294901760
    %v807 = vsub.f32 %v740, %v806
    %v808 = vand.u32 %v807, 4294901760
    %v809 = vsub.f32 %v807, %v808
    %v810 = vand.u32 %v809, 4294901760
    %811 = vmatpush.msra.mxu0 %v810
    %v812 = vand.u32 %v739, 4294901760
    %v813 = vsub.f32 %v739, %v812
    %v814 = vand.u32 %v813, 4294901760
    %v815 = vsub.f32 %v813, %v814
    %v816 = vand.u32 %v815, 4294901760
    %817 = vmatpush.msra.mxu0 %v816
    %v818 = vand.u32 %v738, 4294901760
    %v819 = vsub.f32 %v738, %v818
    %v820 = vand.u32 %v819, 4294901760
    %v821 = vsub.f32 %v819, %v820
    %v822 = vand.u32 %v821, 4294901760
    %823 = vmatpush.msra.mxu0 %v822
    %v824 = vand.u32 %v747, 4294901760
    %825 = vmatmul.f32.gmra.mxu0 %v824
    %v826 = vpop.f32.mrf.mxu0
    %v827 = vadd.f32 %v778, %v826
    %v828 = vand.u32 %v749, 4294901760
    %829 = vmatmul.f32.gmra.mxu0 %v828
    %v830 = vpop.f32.mrf.mxu0
    %v831 = vadd.f32 %v786, %v830
    %832 = vdwg.mxu0
    %833 = vmatpush.msra.mxu0 0.0
    %834 = vmatpush.msra.mxu0 0.0
    %835 = vmatpush.msra.mxu0 0.0
    %836 = vmatpush.msra.mxu0 0.0
    %837 = vmatpush.msra.mxu0 0.0
    %838 = vmatpush.msra.mxu0 0.0
    %839 = vmatpush.msra.mxu0 0.0
    %840 = vmatpush.msra.mxu0 0.0
    %841 = vmatpush.msra.mxu0 0.0
    %842 = vmatpush.msra.mxu0 0.0
    %843 = vmatpush.msra.mxu0 0.0
    %844 = vmatpush.msra.mxu0 0.0
    %v845 = vand.u32 %v741, 4294901760
    %v846 = vsub.f32 %v741, %v845
    %847 = vmatpush.msra.mxu0 %v846
    %v848 = vand.u32 %v740, 4294901760
    %v849 = vsub.f32 %v740, %v848
    %850 = vmatpush.msra.mxu0 %v849
    %v851 = vand.u32 %v739, 4294901760
    %v852 = vsub.f32 %v739, %v851
    %853 = vmatpush.msra.mxu0 %v852
    %v854 = vand.u32 %v738, 4294901760
    %v855 = vsub.f32 %v738, %v854
    %856 = vmatpush.msra.mxu0 %v855
    %v857 = vand.u32 %v747, 4294901760
    %v858 = vsub.f32 %v747, %v857
    %859 = vmatmul.f32.gmra.mxu0 %v858
    %v860 = vpop.f32.mrf.mxu0
    %v861 = vadd.f32 %v827, %v860
    %v862 = vand.u32 %v749, 4294901760
    %v863 = vsub.f32 %v749, %v862
    %864 = vmatmul.f32.gmra.mxu0 %v863
    %v865 = vpop.f32.mrf.mxu0
    %v866 = vadd.f32 %v831, %v865
    %867 = vdwg.mxu0
    %868 = vmatpush.msra.mxu0 0.0
    %869 = vmatpush.msra.mxu0 0.0
    %870 = vmatpush.msra.mxu0 0.0
    %871 = vmatpush.msra.mxu0 0.0
    %872 = vmatpush.msra.mxu0 0.0
    %873 = vmatpush.msra.mxu0 0.0
    %874 = vmatpush.msra.mxu0 0.0
    %875 = vmatpush.msra.mxu0 0.0
    %876 = vmatpush.msra.mxu0 0.0
    %877 = vmatpush.msra.mxu0 0.0
    %878 = vmatpush.msra.mxu0 0.0
    %879 = vmatpush.msra.mxu0 0.0
    %v880 = vand.u32 %v741, 4294901760
    %881 = vmatpush.msra.mxu0 %v880
    %v882 = vand.u32 %v740, 4294901760
    %883 = vmatpush.msra.mxu0 %v882
    %v884 = vand.u32 %v739, 4294901760
    %885 = vmatpush.msra.mxu0 %v884
    %v886 = vand.u32 %v738, 4294901760
    %887 = vmatpush.msra.mxu0 %v886
    %v888 = vand.u32 %v747, 4294901760
    %v889 = vsub.f32 %v747, %v888
    %v890 = vand.u32 %v889, 4294901760
    %891 = vmatmul.f32.gmra.mxu0 %v890
    %v892 = vpop.f32.mrf.mxu0
    %v893 = vadd.f32 %v861, %v892
    %v894 = vand.u32 %v749, 4294901760
    %v895 = vsub.f32 %v749, %v894
    %v896 = vand.u32 %v895, 4294901760
    %897 = vmatmul.f32.gmra.mxu0 %v896
    %v898 = vpop.f32.mrf.mxu0
    %v899 = vadd.f32 %v866, %v898
    %900 = vdwg.mxu0
    %901 = vmatpush.msra.mxu0 0.0
    %902 = vmatpush.msra.mxu0 0.0
    %903 = vmatpush.msra.mxu0 0.0
    %904 = vmatpush.msra.mxu0 0.0
    %905 = vmatpush.msra.mxu0 0.0
    %906 = vmatpush.msra.mxu0 0.0
    %907 = vmatpush.msra.mxu0 0.0
    %908 = vmatpush.msra.mxu0 0.0
    %909 = vmatpush.msra.mxu0 0.0
    %910 = vmatpush.msra.mxu0 0.0
    %911 = vmatpush.msra.mxu0 0.0
    %912 = vmatpush.msra.mxu0 0.0
    %v913 = vand.u32 %v741, 4294901760
    %v914 = vsub.f32 %v741, %v913
    %v915 = vand.u32 %v914, 4294901760
    %916 = vmatpush.msra.mxu0 %v915
    %v917 = vand.u32 %v740, 4294901760
    %v918 = vsub.f32 %v740, %v917
    %v919 = vand.u32 %v918, 4294901760
    %920 = vmatpush.msra.mxu0 %v919
    %v921 = vand.u32 %v739, 4294901760
    %v922 = vsub.f32 %v739, %v921
    %v923 = vand.u32 %v922, 4294901760
    %924 = vmatpush.msra.mxu0 %v923
    %v925 = vand.u32 %v738, 4294901760
    %v926 = vsub.f32 %v738, %v925
    %v927 = vand.u32 %v926, 4294901760
    %928 = vmatpush.msra.mxu0 %v927
    %v929 = vand.u32 %v747, 4294901760
    %930 = vmatmul.f32.gmra.mxu0 %v929
    %v931 = vpop.f32.mrf.mxu0
    %v932 = vadd.f32 %v893, %v931
    %v933 = vand.u32 %v749, 4294901760
    %934 = vmatmul.f32.gmra.mxu0 %v933
    %v935 = vpop.f32.mrf.mxu0
    %v936 = vadd.f32 %v899, %v935
    %937 = vdwg.mxu0
    %938 = vmatpush.msra.mxu0 0.0
    %939 = vmatpush.msra.mxu0 0.0
    %940 = vmatpush.msra.mxu0 0.0
    %941 = vmatpush.msra.mxu0 0.0
    %942 = vmatpush.msra.mxu0 0.0
    %943 = vmatpush.msra.mxu0 0.0
    %944 = vmatpush.msra.mxu0 0.0
    %945 = vmatpush.msra.mxu0 0.0
    %946 = vmatpush.msra.mxu0 0.0
    %947 = vmatpush.msra.mxu0 0.0
    %948 = vmatpush.msra.mxu0 0.0
    %949 = vmatpush.msra.mxu0 0.0
    %v950 = vand.u32 %v741, 4294901760
    %951 = vmatpush.msra.mxu0 %v950
    %v952 = vand.u32 %v740, 4294901760
    %953 = vmatpush.msra.mxu0 %v952
    %v954 = vand.u32 %v739, 4294901760
    %955 = vmatpush.msra.mxu0 %v954
    %v956 = vand.u32 %v738, 4294901760
    %957 = vmatpush.msra.mxu0 %v956
    %v958 = vand.u32 %v747, 4294901760
    %959 = vmatmul.f32.gmra.mxu0 %v958
    %v960 = vpop.f32.mrf.mxu0
    %v961 = vadd.f32 %v932, %v960
    %v962 = vand.u32 %v749, 4294901760
    %963 = vmatmul.f32.gmra.mxu0 %v962
    %v964 = vpop.f32.mrf.mxu0
    %v965 = vadd.f32 %v936, %v964
    %966 = vdwg.mxu0
    %969 = vrot.lane.b32.xlu0 %v961, 32
    %v970 = vpop.permute.xlu0 %969
    %971 = vrot.lane.b32.xlu0 %v965, 32
    %v972 = vpop.permute.xlu0 %971
    %975 = vrot.lane.b32.xlu0 %v961, 64
    %v976 = vpop.permute.xlu0 %975
    %977 = vrot.lane.b32.xlu0 %v965, 64
    %v978 = vpop.permute.xlu0 %977
    %981 = vrot.lane.b32.xlu0 %v961, 96
    %v982 = vpop.permute.xlu0 %981
    %983 = vrot.lane.b32.xlu0 %v965, 96
    %v984 = vpop.permute.xlu0 %983
    %v987 = vsel %vm520, %v961, %v970
    %v988 = vsel %vm520, %v965, %v972
    %vm989 = vcmask 523264
    %v990 = vsel %vm989, %v987, %v976
    %v991 = vsel %vm989, %v988, %v978
    %vm992 = vcmask 785408
    %v993 = vsel %vm992, %v990, %v982
    %v994 = vsel %vm992, %v991, %v984
    %995 = vrot.lane.b32.xlu0 %v737, 32
    %v996 = vpop.permute.xlu0 %995
    %997 = vrot.lane.b32.xlu0 %v734, 32
    %v998 = vpop.permute.xlu0 %997
    %1001 = vrot.lane.b32.xlu0 %v737, 64
    %v1002 = vpop.permute.xlu0 %1001
    %1003 = vrot.lane.b32.xlu0 %v734, 64
    %v1004 = vpop.permute.xlu0 %1003
    %1007 = vrot.lane.b32.xlu0 %v737, 96
    %v1008 = vpop.permute.xlu0 %1007
    %1009 = vrot.lane.b32.xlu0 %v734, 96
    %v1010 = vpop.permute.xlu0 %1009
    %v1013 = vsel %vm520, %v737, %v996
    %v1014 = vsel %vm520, %v734, %v998
    %v1015 = vsel %vm989, %v1013, %v1002
    %v1016 = vsel %vm989, %v1014, %v1004
    %v1017 = vsel %vm992, %v1015, %v1008
    %v1018 = vsel %vm992, %v1016, %v1010
    %v1019 = vld [vmem:[#allocation9] sm:$0xff]
    %v1020 = vld [vmem:[#allocation9 + $0x8] sm:$0xff]
    %v1021 = vld [vmem:[#allocation9 + $0x10] sm:$0xff]
    %v1022 = vld [vmem:[#allocation9 + $0x18] sm:$0xff]
    %v1023 = vld [vmem:[#allocation9 + $0x20] sm:$0xff]
    %v1024 = vld [vmem:[#allocation9 + $0x28] sm:$0xff]
    %v1025 = vld [vmem:[#allocation9 + $0x30] sm:$0xff]
    %v1026 = vld [vmem:[#allocation9 + $0x38] sm:$0xff]
    %v1027 = vld [vmem:[#allocation9 + $0x40] sm:$0xff]
    %v1028 = vld [vmem:[#allocation9 + $0x48] sm:$0xff]
    %v1029 = vld [vmem:[#allocation9 + $0x50] sm:$0xff]
    %v1030 = vld [vmem:[#allocation9 + $0x58] sm:$0xff]
    %v1031 = vld [vmem:[#allocation9 + $0x60] sm:$0xff]
    %v1032 = vld [vmem:[#allocation9 + $0x68] sm:$0xff]
    %v1033 = vld [vmem:[#allocation9 + $0x70] sm:$0xff]
    %v1034 = vld [vmem:[#allocation9 + $0x78] sm:$0xff]
    %v1035 = vld [vmem:[#allocation9 + $0x80] sm:$0xff]
    %v1036 = vld [vmem:[#allocation9 + $0x88] sm:$0xff]
    %v1037 = vld [vmem:[#allocation9 + $0x90] sm:$0xff]
    %v1038 = vld [vmem:[#allocation9 + $0x98] sm:$0xff]
    %v1039 = vld [vmem:[#allocation9 + $0xa0] sm:$0xff]
    %v1040 = vld [vmem:[#allocation9 + $0xa8] sm:$0xff]
    %v1041 = vld [vmem:[#allocation9 + $0xb0] sm:$0xff]
    %v1042 = vld [vmem:[#allocation9 + $0xb8] sm:$0xff]
    %v1043 = vld [vmem:[#allocation9 + $0xc0] sm:$0xff]
    %v1044 = vld [vmem:[#allocation9 + $0xc8] sm:$0xff]
    %v1045 = vld [vmem:[#allocation9 + $0xd0] sm:$0xff]
    %v1046 = vld [vmem:[#allocation9 + $0xd8] sm:$0xff]
    %v1047 = vld [vmem:[#allocation9 + $0xe0] sm:$0xff]
    %v1048 = vld [vmem:[#allocation9 + $0xe8] sm:$0xff]
    %v1049 = vld [vmem:[#allocation9 + $0xf0] sm:$0xff]
    %v1050 = vld [vmem:[#allocation9 + $0xf8] sm:$0xff]
    %v1051 = vld [vmem:[#allocation9 + $0x100] sm:$0xff]
    %v1052 = vld [vmem:[#allocation9 + $0x108] sm:$0xff]
    %v1053 = vld [vmem:[#allocation9 + $0x110] sm:$0xff]
    %v1054 = vld [vmem:[#allocation9 + $0x118] sm:$0xff]
    %v1055 = vld [vmem:[#allocation9 + $0x120] sm:$0xff]
    %v1056 = vld [vmem:[#allocation9 + $0x128] sm:$0xff]
    %v1057 = vld [vmem:[#allocation9 + $0x130] sm:$0xff]
    %v1058 = vld [vmem:[#allocation9 + $0x138] sm:$0xff]
    %v1059 = vld [vmem:[#allocation9 + $0x140] sm:$0xff]
    %v1060 = vld [vmem:[#allocation9 + $0x148] sm:$0xff]
    %v1061 = vld [vmem:[#allocation9 + $0x150] sm:$0xff]
    %v1062 = vld [vmem:[#allocation9 + $0x158] sm:$0xff]
    %v1063 = vld [vmem:[#allocation9 + $0x160] sm:$0xff]
    %v1064 = vld [vmem:[#allocation9 + $0x168] sm:$0xff]
    %v1065 = vld [vmem:[#allocation9 + $0x170] sm:$0xff]
    %v1066 = vld [vmem:[#allocation9 + $0x178] sm:$0xff]
    %v1068 = vsel %vm989, %v116, 0
    %v1071 = vsel %vm989, %v118, 0
    %v1073 = vand.u32 %v1049, 4294901760
    %1074 = vmatpush.msra.mxu0 %v1073
    %v1075 = vand.u32 %v1047, 4294901760
    %1076 = vmatpush.msra.mxu0 %v1075
    %v1077 = vand.u32 %v1045, 4294901760
    %1078 = vmatpush.msra.mxu0 %v1077
    %v1079 = vand.u32 %v1043, 4294901760
    %1080 = vmatpush.msra.mxu0 %v1079
    %v1081 = vand.u32 %v1041, 4294901760
    %1082 = vmatpush.msra.mxu0 %v1081
    %v1083 = vand.u32 %v1039, 4294901760
    %1084 = vmatpush.msra.mxu0 %v1083
    %v1085 = vand.u32 %v1037, 4294901760
    %1086 = vmatpush.msra.mxu0 %v1085
    %v1087 = vand.u32 %v1035, 4294901760
    %1088 = vmatpush.msra.mxu0 %v1087
    %v1089 = vand.u32 %v1033, 4294901760
    %1090 = vmatpush.msra.mxu0 %v1089
    %v1091 = vand.u32 %v1031, 4294901760
    %1092 = vmatpush.msra.mxu0 %v1091
    %v1093 = vand.u32 %v1029, 4294901760
    %1094 = vmatpush.msra.mxu0 %v1093
    %v1095 = vand.u32 %v1027, 4294901760
    %1096 = vmatpush.msra.mxu0 %v1095
    %v1097 = vand.u32 %v1025, 4294901760
    %1098 = vmatpush.msra.mxu0 %v1097
    %v1099 = vand.u32 %v1023, 4294901760
    %1100 = vmatpush.msra.mxu0 %v1099
    %v1101 = vand.u32 %v1021, 4294901760
    %1102 = vmatpush.msra.mxu0 %v1101
    %v1103 = vand.u32 %v1019, 4294901760
    %1104 = vmatpush.msra.mxu0 %v1103
    %v1105 = vand.u32 %v115, 4294901760
    %v1106 = vsub.f32 %v115, %v1105
    %v1107 = vand.u32 %v1106, 4294901760
    %v1108 = vsub.f32 %v1106, %v1107
    %v1109 = vand.u32 %v1108, 4294901760
    %1110 = vmatmul.f32.gmra.mxu0 %v1109
    %v1111 = vpop.f32.mrf.mxu0
    %v1112 = vadd.f32 %v993, %v1111
    %v1113 = vand.u32 %v117, 4294901760
    %v1114 = vsub.f32 %v117, %v1113
    %v1115 = vand.u32 %v1114, 4294901760
    %v1116 = vsub.f32 %v1114, %v1115
    %v1117 = vand.u32 %v1116, 4294901760
    %1118 = vmatmul.f32.gmra.mxu0 %v1117
    %v1119 = vpop.f32.mrf.mxu0
    %v1120 = vadd.f32 %v994, %v1119
    %1121 = vdwg.mxu0
    %v1122 = vand.u32 %v1049, 4294901760
    %v1123 = vsub.f32 %v1049, %v1122
    %v1124 = vand.u32 %v1123, 4294901760
    %v1125 = vsub.f32 %v1123, %v1124
    %v1126 = vand.u32 %v1125, 4294901760
    %1127 = vmatpush.msra.mxu0 %v1126
    %v1128 = vand.u32 %v1047, 4294901760
    %v1129 = vsub.f32 %v1047, %v1128
    %v1130 = vand.u32 %v1129, 4294901760
    %v1131 = vsub.f32 %v1129, %v1130
    %v1132 = vand.u32 %v1131, 4294901760
    %1133 = vmatpush.msra.mxu0 %v1132
    %v1134 = vand.u32 %v1045, 4294901760
    %v1135 = vsub.f32 %v1045, %v1134
    %v1136 = vand.u32 %v1135, 4294901760
    %v1137 = vsub.f32 %v1135, %v1136
    %v1138 = vand.u32 %v1137, 4294901760
    %1139 = vmatpush.msra.mxu0 %v1138
    %v1140 = vand.u32 %v1043, 4294901760
    %v1141 = vsub.f32 %v1043, %v1140
    %v1142 = vand.u32 %v1141, 4294901760
    %v1143 = vsub.f32 %v1141, %v1142
    %v1144 = vand.u32 %v1143, 4294901760
    %1145 = vmatpush.msra.mxu0 %v1144
    %v1146 = vand.u32 %v1041, 4294901760
    %v1147 = vsub.f32 %v1041, %v1146
    %v1148 = vand.u32 %v1147, 4294901760
    %v1149 = vsub.f32 %v1147, %v1148
    %v1150 = vand.u32 %v1149, 4294901760
    %1151 = vmatpush.msra.mxu0 %v1150
    %v1152 = vand.u32 %v1039, 4294901760
    %v1153 = vsub.f32 %v1039, %v1152
    %v1154 = vand.u32 %v1153, 4294901760
    %v1155 = vsub.f32 %v1153, %v1154
    %v1156 = vand.u32 %v1155, 4294901760
    %1157 = vmatpush.msra.mxu0 %v1156
    %v1158 = vand.u32 %v1037, 4294901760
    %v1159 = vsub.f32 %v1037, %v1158
    %v1160 = vand.u32 %v1159, 4294901760
    %v1161 = vsub.f32 %v1159, %v1160
    %v1162 = vand.u32 %v1161, 4294901760
    %1163 = vmatpush.msra.mxu0 %v1162
    %v1164 = vand.u32 %v1035, 4294901760
    %v1165 = vsub.f32 %v1035, %v1164
    %v1166 = vand.u32 %v1165, 4294901760
    %v1167 = vsub.f32 %v1165, %v1166
    %v1168 = vand.u32 %v1167, 4294901760
    %1169 = vmatpush.msra.mxu0 %v1168
    %v1170 = vand.u32 %v1033, 4294901760
    %v1171 = vsub.f32 %v1033, %v1170
    %v1172 = vand.u32 %v1171, 4294901760
    %v1173 = vsub.f32 %v1171, %v1172
    %v1174 = vand.u32 %v1173, 4294901760
    %1175 = vmatpush.msra.mxu0 %v1174
    %v1176 = vand.u32 %v1031, 4294901760
    %v1177 = vsub.f32 %v1031, %v1176
    %v1178 = vand.u32 %v1177, 4294901760
    %v1179 = vsub.f32 %v1177, %v1178
    %v1180 = vand.u32 %v1179, 4294901760
    %1181 = vmatpush.msra.mxu0 %v1180
    %v1182 = vand.u32 %v1029, 4294901760
    %v1183 = vsub.f32 %v1029, %v1182
    %v1184 = vand.u32 %v1183, 4294901760
    %v1185 = vsub.f32 %v1183, %v1184
    %v1186 = vand.u32 %v1185, 4294901760
    %1187 = vmatpush.msra.mxu0 %v1186
    %v1188 = vand.u32 %v1027, 4294901760
    %v1189 = vsub.f32 %v1027, %v1188
    %v1190 = vand.u32 %v1189, 4294901760
    %v1191 = vsub.f32 %v1189, %v1190
    %v1192 = vand.u32 %v1191, 4294901760
    %1193 = vmatpush.msra.mxu0 %v1192
    %v1194 = vand.u32 %v1025, 4294901760
    %v1195 = vsub.f32 %v1025, %v1194
    %v1196 = vand.u32 %v1195, 4294901760
    %v1197 = vsub.f32 %v1195, %v1196
    %v1198 = vand.u32 %v1197, 4294901760
    %1199 = vmatpush.msra.mxu0 %v1198
    %v1200 = vand.u32 %v1023, 4294901760
    %v1201 = vsub.f32 %v1023, %v1200
    %v1202 = vand.u32 %v1201, 4294901760
    %v1203 = vsub.f32 %v1201, %v1202
    %v1204 = vand.u32 %v1203, 4294901760
    %1205 = vmatpush.msra.mxu0 %v1204
    %v1206 = vand.u32 %v1021, 4294901760
    %v1207 = vsub.f32 %v1021, %v1206
    %v1208 = vand.u32 %v1207, 4294901760
    %v1209 = vsub.f32 %v1207, %v1208
    %v1210 = vand.u32 %v1209, 4294901760
    %1211 = vmatpush.msra.mxu0 %v1210
    %v1212 = vand.u32 %v1019, 4294901760
    %v1213 = vsub.f32 %v1019, %v1212
    %v1214 = vand.u32 %v1213, 4294901760
    %v1215 = vsub.f32 %v1213, %v1214
    %v1216 = vand.u32 %v1215, 4294901760
    %1217 = vmatpush.msra.mxu0 %v1216
    %v1218 = vand.u32 %v115, 4294901760
    %1219 = vmatmul.f32.gmra.mxu0 %v1218
    %v1220 = vpop.f32.mrf.mxu0
    %v1221 = vadd.f32 %v1112, %v1220
    %v1222 = vand.u32 %v117, 4294901760
    %1223 = vmatmul.f32.gmra.mxu0 %v1222
    %v1224 = vpop.f32.mrf.mxu0
    %v1225 = vadd.f32 %v1120, %v1224
    %1226 = vdwg.mxu0
    %v1227 = vand.u32 %v1049, 4294901760
    %v1228 = vsub.f32 %v1049, %v1227
    %1229 = vmatpush.msra.mxu0 %v1228
    %v1230 = vand.u32 %v1047, 4294901760
    %v1231 = vsub.f32 %v1047, %v1230
    %1232 = vmatpush.msra.mxu0 %v1231
    %v1233 = vand.u32 %v1045, 4294901760
    %v1234 = vsub.f32 %v1045, %v1233
    %1235 = vmatpush.msra.mxu0 %v1234
    %v1236 = vand.u32 %v1043, 4294901760
    %v1237 = vsub.f32 %v1043, %v1236
    %1238 = vmatpush.msra.mxu0 %v1237
    %v1239 = vand.u32 %v1041, 4294901760
    %v1240 = vsub.f32 %v1041, %v1239
    %1241 = vmatpush.msra.mxu0 %v1240
    %v1242 = vand.u32 %v1039, 4294901760
    %v1243 = vsub.f32 %v1039, %v1242
    %1244 = vmatpush.msra.mxu0 %v1243
    %v1245 = vand.u32 %v1037, 4294901760
    %v1246 = vsub.f32 %v1037, %v1245
    %1247 = vmatpush.msra.mxu0 %v1246
    %v1248 = vand.u32 %v1035, 4294901760
    %v1249 = vsub.f32 %v1035, %v1248
    %1250 = vmatpush.msra.mxu0 %v1249
    %v1251 = vand.u32 %v1033, 4294901760
    %v1252 = vsub.f32 %v1033, %v1251
    %1253 = vmatpush.msra.mxu0 %v1252
    %v1254 = vand.u32 %v1031, 4294901760
    %v1255 = vsub.f32 %v1031, %v1254
    %1256 = vmatpush.msra.mxu0 %v1255
    %v1257 = vand.u32 %v1029, 4294901760
    %v1258 = vsub.f32 %v1029, %v1257
    %1259 = vmatpush.msra.mxu0 %v1258
    %v1260 = vand.u32 %v1027, 4294901760
    %v1261 = vsub.f32 %v1027, %v1260
    %1262 = vmatpush.msra.mxu0 %v1261
    %v1263 = vand.u32 %v1025, 4294901760
    %v1264 = vsub.f32 %v1025, %v1263
    %1265 = vmatpush.msra.mxu0 %v1264
    %v1266 = vand.u32 %v1023, 4294901760
    %v1267 = vsub.f32 %v1023, %v1266
    %1268 = vmatpush.msra.mxu0 %v1267
    %v1269 = vand.u32 %v1021, 4294901760
    %v1270 = vsub.f32 %v1021, %v1269
    %1271 = vmatpush.msra.mxu0 %v1270
    %v1272 = vand.u32 %v1019, 4294901760
    %v1273 = vsub.f32 %v1019, %v1272
    %1274 = vmatpush.msra.mxu0 %v1273
    %v1275 = vand.u32 %v115, 4294901760
    %v1276 = vsub.f32 %v115, %v1275
    %1277 = vmatmul.f32.gmra.mxu0 %v1276
    %v1278 = vpop.f32.mrf.mxu0
    %v1279 = vadd.f32 %v1221, %v1278
    %v1280 = vand.u32 %v117, 4294901760
    %v1281 = vsub.f32 %v117, %v1280
    %1282 = vmatmul.f32.gmra.mxu0 %v1281
    %v1283 = vpop.f32.mrf.mxu0
    %v1284 = vadd.f32 %v1225, %v1283
    %1285 = vdwg.mxu0
    %v1286 = vand.u32 %v1049, 4294901760
    %1287 = vmatpush.msra.mxu0 %v1286
    %v1288 = vand.u32 %v1047, 4294901760
    %1289 = vmatpush.msra.mxu0 %v1288
    %v1290 = vand.u32 %v1045, 4294901760
    %1291 = vmatpush.msra.mxu0 %v1290
    %v1292 = vand.u32 %v1043, 4294901760
    %1293 = vmatpush.msra.mxu0 %v1292
    %v1294 = vand.u32 %v1041, 4294901760
    %1295 = vmatpush.msra.mxu0 %v1294
    %v1296 = vand.u32 %v1039, 4294901760
    %1297 = vmatpush.msra.mxu0 %v1296
    %v1298 = vand.u32 %v1037, 4294901760
    %1299 = vmatpush.msra.mxu0 %v1298
    %v1300 = vand.u32 %v1035, 4294901760
    %1301 = vmatpush.msra.mxu0 %v1300
    %v1302 = vand.u32 %v1033, 4294901760
    %1303 = vmatpush.msra.mxu0 %v1302
    %v1304 = vand.u32 %v1031, 4294901760
    %1305 = vmatpush.msra.mxu0 %v1304
    %v1306 = vand.u32 %v1029, 4294901760
    %1307 = vmatpush.msra.mxu0 %v1306
    %v1308 = vand.u32 %v1027, 4294901760
    %1309 = vmatpush.msra.mxu0 %v1308
    %v1310 = vand.u32 %v1025, 4294901760
    %1311 = vmatpush.msra.mxu0 %v1310
    %v1312 = vand.u32 %v1023, 4294901760
    %1313 = vmatpush.msra.mxu0 %v1312
    %v1314 = vand.u32 %v1021, 4294901760
    %1315 = vmatpush.msra.mxu0 %v1314
    %v1316 = vand.u32 %v1019, 4294901760
    %1317 = vmatpush.msra.mxu0 %v1316
    %v1318 = vand.u32 %v115, 4294901760
    %v1319 = vsub.f32 %v115, %v1318
    %v1320 = vand.u32 %v1319, 4294901760
    %1321 = vmatmul.f32.gmra.mxu0 %v1320
    %v1322 = vpop.f32.mrf.mxu0
    %v1323 = vadd.f32 %v1279, %v1322
    %v1324 = vand.u32 %v117, 4294901760
    %v1325 = vsub.f32 %v117, %v1324
    %v1326 = vand.u32 %v1325, 4294901760
    %1327 = vmatmul.f32.gmra.mxu0 %v1326
    %v1328 = vpop.f32.mrf.mxu0
    %v1329 = vadd.f32 %v1284, %v1328
    %1330 = vdwg.mxu0
    %v1331 = vand.u32 %v1049, 4294901760
    %v1332 = vsub.f32 %v1049, %v1331
    %v1333 = vand.u32 %v1332, 4294901760
    %1334 = vmatpush.msra.mxu0 %v1333
    %v1335 = vand.u32 %v1047, 4294901760
    %v1336 = vsub.f32 %v1047, %v1335
    %v1337 = vand.u32 %v1336, 4294901760
    %1338 = vmatpush.msra.mxu0 %v1337
    %v1339 = vand.u32 %v1045, 4294901760
    %v1340 = vsub.f32 %v1045, %v1339
    %v1341 = vand.u32 %v1340, 4294901760
    %1342 = vmatpush.msra.mxu0 %v1341
    %v1343 = vand.u32 %v1043, 4294901760
    %v1344 = vsub.f32 %v1043, %v1343
    %v1345 = vand.u32 %v1344, 4294901760
    %1346 = vmatpush.msra.mxu0 %v1345
    %v1347 = vand.u32 %v1041, 4294901760
    %v1348 = vsub.f32 %v1041, %v1347
    %v1349 = vand.u32 %v1348, 4294901760
    %1350 = vmatpush.msra.mxu0 %v1349
    %v1351 = vand.u32 %v1039, 4294901760
    %v1352 = vsub.f32 %v1039, %v1351
    %v1353 = vand.u32 %v1352, 4294901760
    %1354 = vmatpush.msra.mxu0 %v1353
    %v1355 = vand.u32 %v1037, 4294901760
    %v1356 = vsub.f32 %v1037, %v1355
    %v1357 = vand.u32 %v1356, 4294901760
    %1358 = vmatpush.msra.mxu0 %v1357
    %v1359 = vand.u32 %v1035, 4294901760
    %v1360 = vsub.f32 %v1035, %v1359
    %v1361 = vand.u32 %v1360, 4294901760
    %1362 = vmatpush.msra.mxu0 %v1361
    %v1363 = vand.u32 %v1033, 4294901760
    %v1364 = vsub.f32 %v1033, %v1363
    %v1365 = vand.u32 %v1364, 4294901760
    %1366 = vmatpush.msra.mxu0 %v1365
    %v1367 = vand.u32 %v1031, 4294901760
    %v1368 = vsub.f32 %v1031, %v1367
    %v1369 = vand.u32 %v1368, 4294901760
    %1370 = vmatpush.msra.mxu0 %v1369
    %v1371 = vand.u32 %v1029, 4294901760
    %v1372 = vsub.f32 %v1029, %v1371
    %v1373 = vand.u32 %v1372, 4294901760
    %1374 = vmatpush.msra.mxu0 %v1373
    %v1375 = vand.u32 %v1027, 4294901760
    %v1376 = vsub.f32 %v1027, %v1375
    %v1377 = vand.u32 %v1376, 4294901760
    %1378 = vmatpush.msra.mxu0 %v1377
    %v1379 = vand.u32 %v1025, 4294901760
    %v1380 = vsub.f32 %v1025, %v1379
    %v1381 = vand.u32 %v1380, 4294901760
    %1382 = vmatpush.msra.mxu0 %v1381
    %v1383 = vand.u32 %v1023, 4294901760
    %v1384 = vsub.f32 %v1023, %v1383
    %v1385 = vand.u32 %v1384, 4294901760
    %1386 = vmatpush.msra.mxu0 %v1385
    %v1387 = vand.u32 %v1021, 4294901760
    %v1388 = vsub.f32 %v1021, %v1387
    %v1389 = vand.u32 %v1388, 4294901760
    %1390 = vmatpush.msra.mxu0 %v1389
    %v1391 = vand.u32 %v1019, 4294901760
    %v1392 = vsub.f32 %v1019, %v1391
    %v1393 = vand.u32 %v1392, 4294901760
    %1394 = vmatpush.msra.mxu0 %v1393
    %v1395 = vand.u32 %v115, 4294901760
    %1396 = vmatmul.f32.gmra.mxu0 %v1395
    %v1397 = vpop.f32.mrf.mxu0
    %v1398 = vadd.f32 %v1323, %v1397
    %v1399 = vand.u32 %v117, 4294901760
    %1400 = vmatmul.f32.gmra.mxu0 %v1399
    %v1401 = vpop.f32.mrf.mxu0
    %v1402 = vadd.f32 %v1329, %v1401
    %1403 = vdwg.mxu0
    %v1404 = vand.u32 %v1049, 4294901760
    %1405 = vmatpush.msra.mxu0 %v1404
    %v1406 = vand.u32 %v1047, 4294901760
    %1407 = vmatpush.msra.mxu0 %v1406
    %v1408 = vand.u32 %v1045, 4294901760
    %1409 = vmatpush.msra.mxu0 %v1408
    %v1410 = vand.u32 %v1043, 4294901760
    %1411 = vmatpush.msra.mxu0 %v1410
    %v1412 = vand.u32 %v1041, 4294901760
    %1413 = vmatpush.msra.mxu0 %v1412
    %v1414 = vand.u32 %v1039, 4294901760
    %1415 = vmatpush.msra.mxu0 %v1414
    %v1416 = vand.u32 %v1037, 4294901760
    %1417 = vmatpush.msra.mxu0 %v1416
    %v1418 = vand.u32 %v1035, 4294901760
    %1419 = vmatpush.msra.mxu0 %v1418
    %v1420 = vand.u32 %v1033, 4294901760
    %1421 = vmatpush.msra.mxu0 %v1420
    %v1422 = vand.u32 %v1031, 4294901760
    %1423 = vmatpush.msra.mxu0 %v1422
    %v1424 = vand.u32 %v1029, 4294901760
    %1425 = vmatpush.msra.mxu0 %v1424
    %v1426 = vand.u32 %v1027, 4294901760
    %1427 = vmatpush.msra.mxu0 %v1426
    %v1428 = vand.u32 %v1025, 4294901760
    %1429 = vmatpush.msra.mxu0 %v1428
    %v1430 = vand.u32 %v1023, 4294901760
    %1431 = vmatpush.msra.mxu0 %v1430
    %v1432 = vand.u32 %v1021, 4294901760
    %1433 = vmatpush.msra.mxu0 %v1432
    %v1434 = vand.u32 %v1019, 4294901760
    %1435 = vmatpush.msra.mxu0 %v1434
    %v1436 = vand.u32 %v115, 4294901760
    %1437 = vmatmul.f32.gmra.mxu0 %v1436
    %v1438 = vpop.f32.mrf.mxu0
    %v1439 = vadd.f32 %v1398, %v1438
    %v1440 = vand.u32 %v117, 4294901760
    %1441 = vmatmul.f32.gmra.mxu0 %v1440
    %v1442 = vpop.f32.mrf.mxu0
    %v1443 = vadd.f32 %v1402, %v1442
    %1444 = vdwg.mxu0
    %1445 = vmatpush.msra.mxu0 0.0
    %1446 = vmatpush.msra.mxu0 0.0
    %1447 = vmatpush.msra.mxu0 0.0
    %1448 = vmatpush.msra.mxu0 0.0
    %1449 = vmatpush.msra.mxu0 0.0
    %1450 = vmatpush.msra.mxu0 0.0
    %1451 = vmatpush.msra.mxu0 0.0
    %1452 = vmatpush.msra.mxu0 0.0
    %v1453 = vand.u32 %v1065, 4294901760
    %1454 = vmatpush.msra.mxu0 %v1453
    %v1455 = vand.u32 %v1063, 4294901760
    %1456 = vmatpush.msra.mxu0 %v1455
    %v1457 = vand.u32 %v1061, 4294901760
    %1458 = vmatpush.msra.mxu0 %v1457
    %v1459 = vand.u32 %v1059, 4294901760
    %1460 = vmatpush.msra.mxu0 %v1459
    %v1461 = vand.u32 %v1057, 4294901760
    %1462 = vmatpush.msra.mxu0 %v1461
    %v1463 = vand.u32 %v1055, 4294901760
    %1464 = vmatpush.msra.mxu0 %v1463
    %v1465 = vand.u32 %v1053, 4294901760
    %1466 = vmatpush.msra.mxu0 %v1465
    %v1467 = vand.u32 %v1051, 4294901760
    %1468 = vmatpush.msra.mxu0 %v1467
    %v1469 = vand.u32 %v1068, 4294901760
    %v1470 = vsub.f32 %v1068, %v1469
    %v1471 = vand.u32 %v1470, 4294901760
    %v1472 = vsub.f32 %v1470, %v1471
    %v1473 = vand.u32 %v1472, 4294901760
    %1474 = vmatmul.f32.gmra.mxu0 %v1473
    %v1475 = vpop.f32.mrf.mxu0
    %v1476 = vadd.f32 %v1439, %v1475
    %v1477 = vand.u32 %v1071, 4294901760
    %v1478 = vsub.f32 %v1071, %v1477
    %v1479 = vand.u32 %v1478, 4294901760
    %v1480 = vsub.f32 %v1478, %v1479
    %v1481 = vand.u32 %v1480, 4294901760
    %1482 = vmatmul.f32.gmra.mxu0 %v1481
    %v1483 = vpop.f32.mrf.mxu0
    %v1484 = vadd.f32 %v1443, %v1483
    %1485 = vdwg.mxu0
    %1486 = vmatpush.msra.mxu0 0.0
    %1487 = vmatpush.msra.mxu0 0.0
    %1488 = vmatpush.msra.mxu0 0.0
    %1489 = vmatpush.msra.mxu0 0.0
    %1490 = vmatpush.msra.mxu0 0.0
    %1491 = vmatpush.msra.mxu0 0.0
    %1492 = vmatpush.msra.mxu0 0.0
    %1493 = vmatpush.msra.mxu0 0.0
    %v1494 = vand.u32 %v1065, 4294901760
    %v1495 = vsub.f32 %v1065, %v1494
    %v1496 = vand.u32 %v1495, 4294901760
    %v1497 = vsub.f32 %v1495, %v1496
    %v1498 = vand.u32 %v1497, 4294901760
    %1499 = vmatpush.msra.mxu0 %v1498
    %v1500 = vand.u32 %v1063, 4294901760
    %v1501 = vsub.f32 %v1063, %v1500
    %v1502 = vand.u32 %v1501, 4294901760
    %v1503 = vsub.f32 %v1501, %v1502
    %v1504 = vand.u32 %v1503, 4294901760
    %1505 = vmatpush.msra.mxu0 %v1504
    %v1506 = vand.u32 %v1061, 4294901760
    %v1507 = vsub.f32 %v1061, %v1506
    %v1508 = vand.u32 %v1507, 4294901760
    %v1509 = vsub.f32 %v1507, %v1508
    %v1510 = vand.u32 %v1509, 4294901760
    %1511 = vmatpush.msra.mxu0 %v1510
    %v1512 = vand.u32 %v1059, 4294901760
    %v1513 = vsub.f32 %v1059, %v1512
    %v1514 = vand.u32 %v1513, 4294901760
    %v1515 = vsub.f32 %v1513, %v1514
    %v1516 = vand.u32 %v1515, 4294901760
    %1517 = vmatpush.msra.mxu0 %v1516
    %v1518 = vand.u32 %v1057, 4294901760
    %v1519 = vsub.f32 %v1057, %v1518
    %v1520 = vand.u32 %v1519, 4294901760
    %v1521 = vsub.f32 %v1519, %v1520
    %v1522 = vand.u32 %v1521, 4294901760
    %1523 = vmatpush.msra.mxu0 %v1522
    %v1524 = vand.u32 %v1055, 4294901760
    %v1525 = vsub.f32 %v1055, %v1524
    %v1526 = vand.u32 %v1525, 4294901760
    %v1527 = vsub.f32 %v1525, %v1526
    %v1528 = vand.u32 %v1527, 4294901760
    %1529 = vmatpush.msra.mxu0 %v1528
    %v1530 = vand.u32 %v1053, 4294901760
    %v1531 = vsub.f32 %v1053, %v1530
    %v1532 = vand.u32 %v1531, 4294901760
    %v1533 = vsub.f32 %v1531, %v1532
    %v1534 = vand.u32 %v1533, 4294901760
    %1535 = vmatpush.msra.mxu0 %v1534
    %v1536 = vand.u32 %v1051, 4294901760
    %v1537 = vsub.f32 %v1051, %v1536
    %v1538 = vand.u32 %v1537, 4294901760
    %v1539 = vsub.f32 %v1537, %v1538
    %v1540 = vand.u32 %v1539, 4294901760
    %1541 = vmatpush.msra.mxu0 %v1540
    %v1542 = vand.u32 %v1068, 4294901760
    %1543 = vmatmul.f32.gmra.mxu0 %v1542
    %v1544 = vpop.f32.mrf.mxu0
    %v1545 = vadd.f32 %v1476, %v1544
    %v1546 = vand.u32 %v1071, 4294901760
    %1547 = vmatmul.f32.gmra.mxu0 %v1546
    %v1548 = vpop.f32.mrf.mxu0
    %v1549 = vadd.f32 %v1484, %v1548
    %1550 = vdwg.mxu0
    %1551 = vmatpush.msra.mxu0 0.0
    %1552 = vmatpush.msra.mxu0 0.0
    %1553 = vmatpush.msra.mxu0 0.0
    %1554 = vmatpush.msra.mxu0 0.0
    %1555 = vmatpush.msra.mxu0 0.0
    %1556 = vmatpush.msra.mxu0 0.0
    %1557 = vmatpush.msra.mxu0 0.0
    %1558 = vmatpush.msra.mxu0 0.0
    %v1559 = vand.u32 %v1065, 4294901760
    %v1560 = vsub.f32 %v1065, %v1559
    %1561 = vmatpush.msra.mxu0 %v1560
    %v1562 = vand.u32 %v1063, 4294901760
    %v1563 = vsub.f32 %v1063, %v1562
    %1564 = vmatpush.msra.mxu0 %v1563
    %v1565 = vand.u32 %v1061, 4294901760
    %v1566 = vsub.f32 %v1061, %v1565
    %1567 = vmatpush.msra.mxu0 %v1566
    %v1568 = vand.u32 %v1059, 4294901760
    %v1569 = vsub.f32 %v1059, %v1568
    %1570 = vmatpush.msra.mxu0 %v1569
    %v1571 = vand.u32 %v1057, 4294901760
    %v1572 = vsub.f32 %v1057, %v1571
    %1573 = vmatpush.msra.mxu0 %v1572
    %v1574 = vand.u32 %v1055, 4294901760
    %v1575 = vsub.f32 %v1055, %v1574
    %1576 = vmatpush.msra.mxu0 %v1575
    %v1577 = vand.u32 %v1053, 4294901760
    %v1578 = vsub.f32 %v1053, %v1577
    %1579 = vmatpush.msra.mxu0 %v1578
    %v1580 = vand.u32 %v1051, 4294901760
    %v1581 = vsub.f32 %v1051, %v1580
    %1582 = vmatpush.msra.mxu0 %v1581
    %v1583 = vand.u32 %v1068, 4294901760
    %v1584 = vsub.f32 %v1068, %v1583
    %1585 = vmatmul.f32.gmra.mxu0 %v1584
    %v1586 = vpop.f32.mrf.mxu0
    %v1587 = vadd.f32 %v1545, %v1586
    %v1588 = vand.u32 %v1071, 4294901760
    %v1589 = vsub.f32 %v1071, %v1588
    %1590 = vmatmul.f32.gmra.mxu0 %v1589
    %v1591 = vpop.f32.mrf.mxu0
    %v1592 = vadd.f32 %v1549, %v1591
    %1593 = vdwg.mxu0
    %1594 = vmatpush.msra.mxu0 0.0
    %1595 = vmatpush.msra.mxu0 0.0
    %1596 = vmatpush.msra.mxu0 0.0
    %1597 = vmatpush.msra.mxu0 0.0
    %1598 = vmatpush.msra.mxu0 0.0
    %1599 = vmatpush.msra.mxu0 0.0
    %1600 = vmatpush.msra.mxu0 0.0
    %1601 = vmatpush.msra.mxu0 0.0
    %v1602 = vand.u32 %v1065, 4294901760
    %1603 = vmatpush.msra.mxu0 %v1602
    %v1604 = vand.u32 %v1063, 4294901760
    %1605 = vmatpush.msra.mxu0 %v1604
    %v1606 = vand.u32 %v1061, 4294901760
    %1607 = vmatpush.msra.mxu0 %v1606
    %v1608 = vand.u32 %v1059, 4294901760
    %1609 = vmatpush.msra.mxu0 %v1608
    %v1610 = vand.u32 %v1057, 4294901760
    %1611 = vmatpush.msra.mxu0 %v1610
    %v1612 = vand.u32 %v1055, 4294901760
    %1613 = vmatpush.msra.mxu0 %v1612
    %v1614 = vand.u32 %v1053, 4294901760
    %1615 = vmatpush.msra.mxu0 %v1614
    %v1616 = vand.u32 %v1051, 4294901760
    %1617 = vmatpush.msra.mxu0 %v1616
    %v1618 = vand.u32 %v1068, 4294901760
    %v1619 = vsub.f32 %v1068, %v1618
    %v1620 = vand.u32 %v1619, 4294901760
    %1621 = vmatmul.f32.gmra.mxu0 %v1620
    %v1622 = vpop.f32.mrf.mxu0
    %v1623 = vadd.f32 %v1587, %v1622
    %v1624 = vand.u32 %v1071, 4294901760
    %v1625 = vsub.f32 %v1071, %v1624
    %v1626 = vand.u32 %v1625, 4294901760
    %1627 = vmatmul.f32.gmra.mxu0 %v1626
    %v1628 = vpop.f32.mrf.mxu0
    %v1629 = vadd.f32 %v1592, %v1628
    %1630 = vdwg.mxu0
    %1631 = vmatpush.msra.mxu0 0.0
    %1632 = vmatpush.msra.mxu0 0.0
    %1633 = vmatpush.msra.mxu0 0.0
    %1634 = vmatpush.msra.mxu0 0.0
    %1635 = vmatpush.msra.mxu0 0.0
    %1636 = vmatpush.msra.mxu0 0.0
    %1637 = vmatpush.msra.mxu0 0.0
    %1638 = vmatpush.msra.mxu0 0.0
    %v1639 = vand.u32 %v1065, 4294901760
    %v1640 = vsub.f32 %v1065, %v1639
    %v1641 = vand.u32 %v1640, 4294901760
    %1642 = vmatpush.msra.mxu0 %v1641
    %v1643 = vand.u32 %v1063, 4294901760
    %v1644 = vsub.f32 %v1063, %v1643
    %v1645 = vand.u32 %v1644, 4294901760
    %1646 = vmatpush.msra.mxu0 %v1645
    %v1647 = vand.u32 %v1061, 4294901760
    %v1648 = vsub.f32 %v1061, %v1647
    %v1649 = vand.u32 %v1648, 4294901760
    %1650 = vmatpush.msra.mxu0 %v1649
    %v1651 = vand.u32 %v1059, 4294901760
    %v1652 = vsub.f32 %v1059, %v1651
    %v1653 = vand.u32 %v1652, 4294901760
    %1654 = vmatpush.msra.mxu0 %v1653
    %v1655 = vand.u32 %v1057, 4294901760
    %v1656 = vsub.f32 %v1057, %v1655
    %v1657 = vand.u32 %v1656, 4294901760
    %1658 = vmatpush.msra.mxu0 %v1657
    %v1659 = vand.u32 %v1055, 4294901760
    %v1660 = vsub.f32 %v1055, %v1659
    %v1661 = vand.u32 %v1660, 4294901760
    %1662 = vmatpush.msra.mxu0 %v1661
    %v1663 = vand.u32 %v1053, 4294901760
    %v1664 = vsub.f32 %v1053, %v1663
    %v1665 = vand.u32 %v1664, 4294901760
    %1666 = vmatpush.msra.mxu0 %v1665
    %v1667 = vand.u32 %v1051, 4294901760
    %v1668 = vsub.f32 %v1051, %v1667
    %v1669 = vand.u32 %v1668, 4294901760
    %1670 = vmatpush.msra.mxu0 %v1669
    %v1671 = vand.u32 %v1068, 4294901760
    %1672 = vmatmul.f32.gmra.mxu0 %v1671
    %v1673 = vpop.f32.mrf.mxu0
    %v1674 = vadd.f32 %v1623, %v1673
    %v1675 = vand.u32 %v1071, 4294901760
    %1676 = vmatmul.f32.gmra.mxu0 %v1675
    %v1677 = vpop.f32.mrf.mxu0
    %v1678 = vadd.f32 %v1629, %v1677
    %1679 = vdwg.mxu0
    %1680 = vmatpush.msra.mxu0 0.0
    %1681 = vmatpush.msra.mxu0 0.0
    %1682 = vmatpush.msra.mxu0 0.0
    %1683 = vmatpush.msra.mxu0 0.0
    %1684 = vmatpush.msra.mxu0 0.0
    %1685 = vmatpush.msra.mxu0 0.0
    %1686 = vmatpush.msra.mxu0 0.0
    %1687 = vmatpush.msra.mxu0 0.0
    %v1688 = vand.u32 %v1065, 4294901760
    %1689 = vmatpush.msra.mxu0 %v1688
    %v1690 = vand.u32 %v1063, 4294901760
    %1691 = vmatpush.msra.mxu0 %v1690
    %v1692 = vand.u32 %v1061, 4294901760
    %1693 = vmatpush.msra.mxu0 %v1692
    %v1694 = vand.u32 %v1059, 4294901760
    %1695 = vmatpush.msra.mxu0 %v1694
    %v1696 = vand.u32 %v1057, 4294901760
    %1697 = vmatpush.msra.mxu0 %v1696
    %v1698 = vand.u32 %v1055, 4294901760
    %1699 = vmatpush.msra.mxu0 %v1698
    %v1700 = vand.u32 %v1053, 4294901760
    %1701 = vmatpush.msra.mxu0 %v1700
    %v1702 = vand.u32 %v1051, 4294901760
    %1703 = vmatpush.msra.mxu0 %v1702
    %v1704 = vand.u32 %v1068, 4294901760
    %1705 = vmatmul.f32.gmra.mxu0 %v1704
    %v1706 = vpop.f32.mrf.mxu0
    %v1707 = vadd.f32 %v1674, %v1706
    %v1708 = vand.u32 %v1071, 4294901760
    %1709 = vmatmul.f32.gmra.mxu0 %v1708
    %v1710 = vpop.f32.mrf.mxu0
    %v1711 = vadd.f32 %v1678, %v1710
    %1712 = vdwg.mxu0
    %v1713 = vand.u32 %v1050, 4294901760
    %1714 = vmatpush.msra.mxu0 %v1713
    %v1715 = vand.u32 %v1048, 4294901760
    %1716 = vmatpush.msra.mxu0 %v1715
    %v1717 = vand.u32 %v1046, 4294901760
    %1718 = vmatpush.msra.mxu0 %v1717
    %v1719 = vand.u32 %v1044, 4294901760
    %1720 = vmatpush.msra.mxu0 %v1719
    %v1721 = vand.u32 %v1042, 4294901760
    %1722 = vmatpush.msra.mxu0 %v1721
    %v1723 = vand.u32 %v1040, 4294901760
    %1724 = vmatpush.msra.mxu0 %v1723
    %v1725 = vand.u32 %v1038, 4294901760
    %1726 = vmatpush.msra.mxu0 %v1725
    %v1727 = vand.u32 %v1036, 4294901760
    %1728 = vmatpush.msra.mxu0 %v1727
    %v1729 = vand.u32 %v1034, 4294901760
    %1730 = vmatpush.msra.mxu0 %v1729
    %v1731 = vand.u32 %v1032, 4294901760
    %1732 = vmatpush.msra.mxu0 %v1731
    %v1733 = vand.u32 %v1030, 4294901760
    %1734 = vmatpush.msra.mxu0 %v1733
    %v1735 = vand.u32 %v1028, 4294901760
    %1736 = vmatpush.msra.mxu0 %v1735
    %v1737 = vand.u32 %v1026, 4294901760
    %1738 = vmatpush.msra.mxu0 %v1737
    %v1739 = vand.u32 %v1024, 4294901760
    %1740 = vmatpush.msra.mxu0 %v1739
    %v1741 = vand.u32 %v1022, 4294901760
    %1742 = vmatpush.msra.mxu0 %v1741
    %v1743 = vand.u32 %v1020, 4294901760
    %1744 = vmatpush.msra.mxu0 %v1743
    %v1745 = vand.u32 %v115, 4294901760
    %v1746 = vsub.f32 %v115, %v1745
    %v1747 = vand.u32 %v1746, 4294901760
    %v1748 = vsub.f32 %v1746, %v1747
    %v1749 = vand.u32 %v1748, 4294901760
    %1750 = vmatmul.f32.gmra.mxu0 %v1749
    %v1751 = vpop.f32.mrf.mxu0
    %v1752 = vadd.f32 %v987, %v1751
    %v1753 = vand.u32 %v117, 4294901760
    %v1754 = vsub.f32 %v117, %v1753
    %v1755 = vand.u32 %v1754, 4294901760
    %v1756 = vsub.f32 %v1754, %v1755
    %v1757 = vand.u32 %v1756, 4294901760
    %1758 = vmatmul.f32.gmra.mxu0 %v1757
    %v1759 = vpop.f32.mrf.mxu0
    %v1760 = vadd.f32 %v988, %v1759
    %1761 = vdwg.mxu0
    %v1762 = vand.u32 %v1050, 4294901760
    %v1763 = vsub.f32 %v1050, %v1762
    %v1764 = vand.u32 %v1763, 4294901760
    %v1765 = vsub.f32 %v1763, %v1764
    %v1766 = vand.u32 %v1765, 4294901760
    %1767 = vmatpush.msra.mxu0 %v1766
    %v1768 = vand.u32 %v1048, 4294901760
    %v1769 = vsub.f32 %v1048, %v1768
    %v1770 = vand.u32 %v1769, 4294901760
    %v1771 = vsub.f32 %v1769, %v1770
    %v1772 = vand.u32 %v1771, 4294901760
    %1773 = vmatpush.msra.mxu0 %v1772
    %v1774 = vand.u32 %v1046, 4294901760
    %v1775 = vsub.f32 %v1046, %v1774
    %v1776 = vand.u32 %v1775, 4294901760
    %v1777 = vsub.f32 %v1775, %v1776
    %v1778 = vand.u32 %v1777, 4294901760
    %1779 = vmatpush.msra.mxu0 %v1778
    %v1780 = vand.u32 %v1044, 4294901760
    %v1781 = vsub.f32 %v1044, %v1780
    %v1782 = vand.u32 %v1781, 4294901760
    %v1783 = vsub.f32 %v1781, %v1782
    %v1784 = vand.u32 %v1783, 4294901760
    %1785 = vmatpush.msra.mxu0 %v1784
    %v1786 = vand.u32 %v1042, 4294901760
    %v1787 = vsub.f32 %v1042, %v1786
    %v1788 = vand.u32 %v1787, 4294901760
    %v1789 = vsub.f32 %v1787, %v1788
    %v1790 = vand.u32 %v1789, 4294901760
    %1791 = vmatpush.msra.mxu0 %v1790
    %v1792 = vand.u32 %v1040, 4294901760
    %v1793 = vsub.f32 %v1040, %v1792
    %v1794 = vand.u32 %v1793, 4294901760
    %v1795 = vsub.f32 %v1793, %v1794
    %v1796 = vand.u32 %v1795, 4294901760
    %1797 = vmatpush.msra.mxu0 %v1796
    %v1798 = vand.u32 %v1038, 4294901760
    %v1799 = vsub.f32 %v1038, %v1798
    %v1800 = vand.u32 %v1799, 4294901760
    %v1801 = vsub.f32 %v1799, %v1800
    %v1802 = vand.u32 %v1801, 4294901760
    %1803 = vmatpush.msra.mxu0 %v1802
    %v1804 = vand.u32 %v1036, 4294901760
    %v1805 = vsub.f32 %v1036, %v1804
    %v1806 = vand.u32 %v1805, 4294901760
    %v1807 = vsub.f32 %v1805, %v1806
    %v1808 = vand.u32 %v1807, 4294901760
    %1809 = vmatpush.msra.mxu0 %v1808
    %v1810 = vand.u32 %v1034, 4294901760
    %v1811 = vsub.f32 %v1034, %v1810
    %v1812 = vand.u32 %v1811, 4294901760
    %v1813 = vsub.f32 %v1811, %v1812
    %v1814 = vand.u32 %v1813, 4294901760
    %1815 = vmatpush.msra.mxu0 %v1814
    %v1816 = vand.u32 %v1032, 4294901760
    %v1817 = vsub.f32 %v1032, %v1816
    %v1818 = vand.u32 %v1817, 4294901760
    %v1819 = vsub.f32 %v1817, %v1818
    %v1820 = vand.u32 %v1819, 4294901760
    %1821 = vmatpush.msra.mxu0 %v1820
    %v1822 = vand.u32 %v1030, 4294901760
    %v1823 = vsub.f32 %v1030, %v1822
    %v1824 = vand.u32 %v1823, 4294901760
    %v1825 = vsub.f32 %v1823, %v1824
    %v1826 = vand.u32 %v1825, 4294901760
    %1827 = vmatpush.msra.mxu0 %v1826
    %v1828 = vand.u32 %v1028, 4294901760
    %v1829 = vsub.f32 %v1028, %v1828
    %v1830 = vand.u32 %v1829, 4294901760
    %v1831 = vsub.f32 %v1829, %v1830
    %v1832 = vand.u32 %v1831, 4294901760
    %1833 = vmatpush.msra.mxu0 %v1832
    %v1834 = vand.u32 %v1026, 4294901760
    %v1835 = vsub.f32 %v1026, %v1834
    %v1836 = vand.u32 %v1835, 4294901760
    %v1837 = vsub.f32 %v1835, %v1836
    %v1838 = vand.u32 %v1837, 4294901760
    %1839 = vmatpush.msra.mxu0 %v1838
    %v1840 = vand.u32 %v1024, 4294901760
    %v1841 = vsub.f32 %v1024, %v1840
    %v1842 = vand.u32 %v1841, 4294901760
    %v1843 = vsub.f32 %v1841, %v1842
    %v1844 = vand.u32 %v1843, 4294901760
    %1845 = vmatpush.msra.mxu0 %v1844
    %v1846 = vand.u32 %v1022, 4294901760
    %v1847 = vsub.f32 %v1022, %v1846
    %v1848 = vand.u32 %v1847, 4294901760
    %v1849 = vsub.f32 %v1847, %v1848
    %v1850 = vand.u32 %v1849, 4294901760
    %1851 = vmatpush.msra.mxu0 %v1850
    %v1852 = vand.u32 %v1020, 4294901760
    %v1853 = vsub.f32 %v1020, %v1852
    %v1854 = vand.u32 %v1853, 4294901760
    %v1855 = vsub.f32 %v1853, %v1854
    %v1856 = vand.u32 %v1855, 4294901760
    %1857 = vmatpush.msra.mxu0 %v1856
    %v1858 = vand.u32 %v115, 4294901760
    %1859 = vmatmul.f32.gmra.mxu0 %v1858
    %v1860 = vpop.f32.mrf.mxu0
    %v1861 = vadd.f32 %v1752, %v1860
    %v1862 = vand.u32 %v117, 4294901760
    %1863 = vmatmul.f32.gmra.mxu0 %v1862
    %v1864 = vpop.f32.mrf.mxu0
    %v1865 = vadd.f32 %v1760, %v1864
    %1866 = vdwg.mxu0
    %v1867 = vand.u32 %v1050, 4294901760
    %v1868 = vsub.f32 %v1050, %v1867
    %1869 = vmatpush.msra.mxu0 %v1868
    %v1870 = vand.u32 %v1048, 4294901760
    %v1871 = vsub.f32 %v1048, %v1870
    %1872 = vmatpush.msra.mxu0 %v1871
    %v1873 = vand.u32 %v1046, 4294901760
    %v1874 = vsub.f32 %v1046, %v1873
    %1875 = vmatpush.msra.mxu0 %v1874
    %v1876 = vand.u32 %v1044, 4294901760
    %v1877 = vsub.f32 %v1044, %v1876
    %1878 = vmatpush.msra.mxu0 %v1877
    %v1879 = vand.u32 %v1042, 4294901760
    %v1880 = vsub.f32 %v1042, %v1879
    %1881 = vmatpush.msra.mxu0 %v1880
    %v1882 = vand.u32 %v1040, 4294901760
    %v1883 = vsub.f32 %v1040, %v1882
    %1884 = vmatpush.msra.mxu0 %v1883
    %v1885 = vand.u32 %v1038, 4294901760
    %v1886 = vsub.f32 %v1038, %v1885
    %1887 = vmatpush.msra.mxu0 %v1886
    %v1888 = vand.u32 %v1036, 4294901760
    %v1889 = vsub.f32 %v1036, %v1888
    %1890 = vmatpush.msra.mxu0 %v1889
    %v1891 = vand.u32 %v1034, 4294901760
    %v1892 = vsub.f32 %v1034, %v1891
    %1893 = vmatpush.msra.mxu0 %v1892
    %v1894 = vand.u32 %v1032, 4294901760
    %v1895 = vsub.f32 %v1032, %v1894
    %1896 = vmatpush.msra.mxu0 %v1895
    %v1897 = vand.u32 %v1030, 4294901760
    %v1898 = vsub.f32 %v1030, %v1897
    %1899 = vmatpush.msra.mxu0 %v1898
    %v1900 = vand.u32 %v1028, 4294901760
    %v1901 = vsub.f32 %v1028, %v1900
    %1902 = vmatpush.msra.mxu0 %v1901
    %v1903 = vand.u32 %v1026, 4294901760
    %v1904 = vsub.f32 %v1026, %v1903
    %1905 = vmatpush.msra.mxu0 %v1904
    %v1906 = vand.u32 %v1024, 4294901760
    %v1907 = vsub.f32 %v1024, %v1906
    %1908 = vmatpush.msra.mxu0 %v1907
    %v1909 = vand.u32 %v1022, 4294901760
    %v1910 = vsub.f32 %v1022, %v1909
    %1911 = vmatpush.msra.mxu0 %v1910
    %v1912 = vand.u32 %v1020, 4294901760
    %v1913 = vsub.f32 %v1020, %v1912
    %1914 = vmatpush.msra.mxu0 %v1913
    %v1915 = vand.u32 %v115, 4294901760
    %v1916 = vsub.f32 %v115, %v1915
    %1917 = vmatmul.f32.gmra.mxu0 %v1916
    %v1918 = vpop.f32.mrf.mxu0
    %v1919 = vadd.f32 %v1861, %v1918
    %v1920 = vand.u32 %v117, 4294901760
    %v1921 = vsub.f32 %v117, %v1920
    %1922 = vmatmul.f32.gmra.mxu0 %v1921
    %v1923 = vpop.f32.mrf.mxu0
    %v1924 = vadd.f32 %v1865, %v1923
    %1925 = vdwg.mxu0
    %v1926 = vand.u32 %v1050, 4294901760
    %1927 = vmatpush.msra.mxu0 %v1926
    %v1928 = vand.u32 %v1048, 4294901760
    %1929 = vmatpush.msra.mxu0 %v1928
    %v1930 = vand.u32 %v1046, 4294901760
    %1931 = vmatpush.msra.mxu0 %v1930
    %v1932 = vand.u32 %v1044, 4294901760
    %1933 = vmatpush.msra.mxu0 %v1932
    %v1934 = vand.u32 %v1042, 4294901760
    %1935 = vmatpush.msra.mxu0 %v1934
    %v1936 = vand.u32 %v1040, 4294901760
    %1937 = vmatpush.msra.mxu0 %v1936
    %v1938 = vand.u32 %v1038, 4294901760
    %1939 = vmatpush.msra.mxu0 %v1938
    %v1940 = vand.u32 %v1036, 4294901760
    %1941 = vmatpush.msra.mxu0 %v1940
    %v1942 = vand.u32 %v1034, 4294901760
    %1943 = vmatpush.msra.mxu0 %v1942
    %v1944 = vand.u32 %v1032, 4294901760
    %1945 = vmatpush.msra.mxu0 %v1944
    %v1946 = vand.u32 %v1030, 4294901760
    %1947 = vmatpush.msra.mxu0 %v1946
    %v1948 = vand.u32 %v1028, 4294901760
    %1949 = vmatpush.msra.mxu0 %v1948
    %v1950 = vand.u32 %v1026, 4294901760
    %1951 = vmatpush.msra.mxu0 %v1950
    %v1952 = vand.u32 %v1024, 4294901760
    %1953 = vmatpush.msra.mxu0 %v1952
    %v1954 = vand.u32 %v1022, 4294901760
    %1955 = vmatpush.msra.mxu0 %v1954
    %v1956 = vand.u32 %v1020, 4294901760
    %1957 = vmatpush.msra.mxu0 %v1956
    %v1958 = vand.u32 %v115, 4294901760
    %v1959 = vsub.f32 %v115, %v1958
    %v1960 = vand.u32 %v1959, 4294901760
    %1961 = vmatmul.f32.gmra.mxu0 %v1960
    %v1962 = vpop.f32.mrf.mxu0
    %v1963 = vadd.f32 %v1919, %v1962
    %v1964 = vand.u32 %v117, 4294901760
    %v1965 = vsub.f32 %v117, %v1964
    %v1966 = vand.u32 %v1965, 4294901760
    %1967 = vmatmul.f32.gmra.mxu0 %v1966
    %v1968 = vpop.f32.mrf.mxu0
    %v1969 = vadd.f32 %v1924, %v1968
    %1970 = vdwg.mxu0
    %v1971 = vand.u32 %v1050, 4294901760
    %v1972 = vsub.f32 %v1050, %v1971
    %v1973 = vand.u32 %v1972, 4294901760
    %1974 = vmatpush.msra.mxu0 %v1973
    %v1975 = vand.u32 %v1048, 4294901760
    %v1976 = vsub.f32 %v1048, %v1975
    %v1977 = vand.u32 %v1976, 4294901760
    %1978 = vmatpush.msra.mxu0 %v1977
    %v1979 = vand.u32 %v1046, 4294901760
    %v1980 = vsub.f32 %v1046, %v1979
    %v1981 = vand.u32 %v1980, 4294901760
    %1982 = vmatpush.msra.mxu0 %v1981
    %v1983 = vand.u32 %v1044, 4294901760
    %v1984 = vsub.f32 %v1044, %v1983
    %v1985 = vand.u32 %v1984, 4294901760
    %1986 = vmatpush.msra.mxu0 %v1985
    %v1987 = vand.u32 %v1042, 4294901760
    %v1988 = vsub.f32 %v1042, %v1987
    %v1989 = vand.u32 %v1988, 4294901760
    %1990 = vmatpush.msra.mxu0 %v1989
    %v1991 = vand.u32 %v1040, 4294901760
    %v1992 = vsub.f32 %v1040, %v1991
    %v1993 = vand.u32 %v1992, 4294901760
    %1994 = vmatpush.msra.mxu0 %v1993
    %v1995 = vand.u32 %v1038, 4294901760
    %v1996 = vsub.f32 %v1038, %v1995
    %v1997 = vand.u32 %v1996, 4294901760
    %1998 = vmatpush.msra.mxu0 %v1997
    %v1999 = vand.u32 %v1036, 4294901760
    %v2000 = vsub.f32 %v1036, %v1999
    %v2001 = vand.u32 %v2000, 4294901760
    %2002 = vmatpush.msra.mxu0 %v2001
    %v2003 = vand.u32 %v1034, 4294901760
    %v2004 = vsub.f32 %v1034, %v2003
    %v2005 = vand.u32 %v2004, 4294901760
    %2006 = vmatpush.msra.mxu0 %v2005
    %v2007 = vand.u32 %v1032, 4294901760
    %v2008 = vsub.f32 %v1032, %v2007
    %v2009 = vand.u32 %v2008, 4294901760
    %2010 = vmatpush.msra.mxu0 %v2009
    %v2011 = vand.u32 %v1030, 4294901760
    %v2012 = vsub.f32 %v1030, %v2011
    %v2013 = vand.u32 %v2012, 4294901760
    %2014 = vmatpush.msra.mxu0 %v2013
    %v2015 = vand.u32 %v1028, 4294901760
    %v2016 = vsub.f32 %v1028, %v2015
    %v2017 = vand.u32 %v2016, 4294901760
    %2018 = vmatpush.msra.mxu0 %v2017
    %v2019 = vand.u32 %v1026, 4294901760
    %v2020 = vsub.f32 %v1026, %v2019
    %v2021 = vand.u32 %v2020, 4294901760
    %2022 = vmatpush.msra.mxu0 %v2021
    %v2023 = vand.u32 %v1024, 4294901760
    %v2024 = vsub.f32 %v1024, %v2023
    %v2025 = vand.u32 %v2024, 4294901760
    %2026 = vmatpush.msra.mxu0 %v2025
    %v2027 = vand.u32 %v1022, 4294901760
    %v2028 = vsub.f32 %v1022, %v2027
    %v2029 = vand.u32 %v2028, 4294901760
    %2030 = vmatpush.msra.mxu0 %v2029
    %v2031 = vand.u32 %v1020, 4294901760
    %v2032 = vsub.f32 %v1020, %v2031
    %v2033 = vand.u32 %v2032, 4294901760
    %2034 = vmatpush.msra.mxu0 %v2033
    %v2035 = vand.u32 %v115, 4294901760
    %2036 = vmatmul.f32.gmra.mxu0 %v2035
    %v2037 = vpop.f32.mrf.mxu0
    %v2038 = vadd.f32 %v1963, %v2037
    %v2039 = vand.u32 %v117, 4294901760
    %2040 = vmatmul.f32.gmra.mxu0 %v2039
    %v2041 = vpop.f32.mrf.mxu0
    %v2042 = vadd.f32 %v1969, %v2041
    %2043 = vdwg.mxu0
    %v2044 = vand.u32 %v1050, 4294901760
    %2045 = vmatpush.msra.mxu0 %v2044
    %v2046 = vand.u32 %v1048, 4294901760
    %2047 = vmatpush.msra.mxu0 %v2046
    %v2048 = vand.u32 %v1046, 4294901760
    %2049 = vmatpush.msra.mxu0 %v2048
    %v2050 = vand.u32 %v1044, 4294901760
    %2051 = vmatpush.msra.mxu0 %v2050
    %v2052 = vand.u32 %v1042, 4294901760
    %2053 = vmatpush.msra.mxu0 %v2052
    %v2054 = vand.u32 %v1040, 4294901760
    %2055 = vmatpush.msra.mxu0 %v2054
    %v2056 = vand.u32 %v1038, 4294901760
    %2057 = vmatpush.msra.mxu0 %v2056
    %v2058 = vand.u32 %v1036, 4294901760
    %2059 = vmatpush.msra.mxu0 %v2058
    %v2060 = vand.u32 %v1034, 4294901760
    %2061 = vmatpush.msra.mxu0 %v2060
    %v2062 = vand.u32 %v1032, 4294901760
    %2063 = vmatpush.msra.mxu0 %v2062
    %v2064 = vand.u32 %v1030, 4294901760
    %2065 = vmatpush.msra.mxu0 %v2064
    %v2066 = vand.u32 %v1028, 4294901760
    %2067 = vmatpush.msra.mxu0 %v2066
    %v2068 = vand.u32 %v1026, 4294901760
    %2069 = vmatpush.msra.mxu0 %v2068
    %v2070 = vand.u32 %v1024, 4294901760
    %2071 = vmatpush.msra.mxu0 %v2070
    %v2072 = vand.u32 %v1022, 4294901760
    %2073 = vmatpush.msra.mxu0 %v2072
    %v2074 = vand.u32 %v1020, 4294901760
    %2075 = vmatpush.msra.mxu0 %v2074
    %v2076 = vand.u32 %v115, 4294901760
    %2077 = vmatmul.f32.gmra.mxu0 %v2076
    %v2078 = vpop.f32.mrf.mxu0
    %v2079 = vadd.f32 %v2038, %v2078
    %v2080 = vand.u32 %v117, 4294901760
    %2081 = vmatmul.f32.gmra.mxu0 %v2080
    %v2082 = vpop.f32.mrf.mxu0
    %v2083 = vadd.f32 %v2042, %v2082
    %2084 = vdwg.mxu0
    %2085 = vmatpush.msra.mxu0 0.0
    %2086 = vmatpush.msra.mxu0 0.0
    %2087 = vmatpush.msra.mxu0 0.0
    %2088 = vmatpush.msra.mxu0 0.0
    %2089 = vmatpush.msra.mxu0 0.0
    %2090 = vmatpush.msra.mxu0 0.0
    %2091 = vmatpush.msra.mxu0 0.0
    %2092 = vmatpush.msra.mxu0 0.0
    %v2093 = vand.u32 %v1066, 4294901760
    %2094 = vmatpush.msra.mxu0 %v2093
    %v2095 = vand.u32 %v1064, 4294901760
    %2096 = vmatpush.msra.mxu0 %v2095
    %v2097 = vand.u32 %v1062, 4294901760
    %2098 = vmatpush.msra.mxu0 %v2097
    %v2099 = vand.u32 %v1060, 4294901760
    %2100 = vmatpush.msra.mxu0 %v2099
    %v2101 = vand.u32 %v1058, 4294901760
    %2102 = vmatpush.msra.mxu0 %v2101
    %v2103 = vand.u32 %v1056, 4294901760
    %2104 = vmatpush.msra.mxu0 %v2103
    %v2105 = vand.u32 %v1054, 4294901760
    %2106 = vmatpush.msra.mxu0 %v2105
    %v2107 = vand.u32 %v1052, 4294901760
    %2108 = vmatpush.msra.mxu0 %v2107
    %v2109 = vand.u32 %v1068, 4294901760
    %v2110 = vsub.f32 %v1068, %v2109
    %v2111 = vand.u32 %v2110, 4294901760
    %v2112 = vsub.f32 %v2110, %v2111
    %v2113 = vand.u32 %v2112, 4294901760
    %2114 = vmatmul.f32.gmra.mxu0 %v2113
    %v2115 = vpop.f32.mrf.mxu0
    %v2116 = vadd.f32 %v2079, %v2115
    %v2117 = vand.u32 %v1071, 4294901760
    %v2118 = vsub.f32 %v1071, %v2117
    %v2119 = vand.u32 %v2118, 4294901760
    %v2120 = vsub.f32 %v2118, %v2119
    %v2121 = vand.u32 %v2120, 4294901760
    %2122 = vmatmul.f32.gmra.mxu0 %v2121
    %v2123 = vpop.f32.mrf.mxu0
    %v2124 = vadd.f32 %v2083, %v2123
    %2125 = vdwg.mxu0
    %2126 = vmatpush.msra.mxu0 0.0
    %2127 = vmatpush.msra.mxu0 0.0
    %2128 = vmatpush.msra.mxu0 0.0
    %2129 = vmatpush.msra.mxu0 0.0
    %2130 = vmatpush.msra.mxu0 0.0
    %2131 = vmatpush.msra.mxu0 0.0
    %2132 = vmatpush.msra.mxu0 0.0
    %2133 = vmatpush.msra.mxu0 0.0
    %v2134 = vand.u32 %v1066, 4294901760
    %v2135 = vsub.f32 %v1066, %v2134
    %v2136 = vand.u32 %v2135, 4294901760
    %v2137 = vsub.f32 %v2135, %v2136
    %v2138 = vand.u32 %v2137, 4294901760
    %2139 = vmatpush.msra.mxu0 %v2138
    %v2140 = vand.u32 %v1064, 4294901760
    %v2141 = vsub.f32 %v1064, %v2140
    %v2142 = vand.u32 %v2141, 4294901760
    %v2143 = vsub.f32 %v2141, %v2142
    %v2144 = vand.u32 %v2143, 4294901760
    %2145 = vmatpush.msra.mxu0 %v2144
    %v2146 = vand.u32 %v1062, 4294901760
    %v2147 = vsub.f32 %v1062, %v2146
    %v2148 = vand.u32 %v2147, 4294901760
    %v2149 = vsub.f32 %v2147, %v2148
    %v2150 = vand.u32 %v2149, 4294901760
    %2151 = vmatpush.msra.mxu0 %v2150
    %v2152 = vand.u32 %v1060, 4294901760
    %v2153 = vsub.f32 %v1060, %v2152
    %v2154 = vand.u32 %v2153, 4294901760
    %v2155 = vsub.f32 %v2153, %v2154
    %v2156 = vand.u32 %v2155, 4294901760
    %2157 = vmatpush.msra.mxu0 %v2156
    %v2158 = vand.u32 %v1058, 4294901760
    %v2159 = vsub.f32 %v1058, %v2158
    %v2160 = vand.u32 %v2159, 4294901760
    %v2161 = vsub.f32 %v2159, %v2160
    %v2162 = vand.u32 %v2161, 4294901760
    %2163 = vmatpush.msra.mxu0 %v2162
    %v2164 = vand.u32 %v1056, 4294901760
    %v2165 = vsub.f32 %v1056, %v2164
    %v2166 = vand.u32 %v2165, 4294901760
    %v2167 = vsub.f32 %v2165, %v2166
    %v2168 = vand.u32 %v2167, 4294901760
    %2169 = vmatpush.msra.mxu0 %v2168
    %v2170 = vand.u32 %v1054, 4294901760
    %v2171 = vsub.f32 %v1054, %v2170
    %v2172 = vand.u32 %v2171, 4294901760
    %v2173 = vsub.f32 %v2171, %v2172
    %v2174 = vand.u32 %v2173, 4294901760
    %2175 = vmatpush.msra.mxu0 %v2174
    %v2176 = vand.u32 %v1052, 4294901760
    %v2177 = vsub.f32 %v1052, %v2176
    %v2178 = vand.u32 %v2177, 4294901760
    %v2179 = vsub.f32 %v2177, %v2178
    %v2180 = vand.u32 %v2179, 4294901760
    %2181 = vmatpush.msra.mxu0 %v2180
    %v2182 = vand.u32 %v1068, 4294901760
    %2183 = vmatmul.f32.gmra.mxu0 %v2182
    %v2184 = vpop.f32.mrf.mxu0
    %v2185 = vadd.f32 %v2116, %v2184
    %v2186 = vand.u32 %v1071, 4294901760
    %2187 = vmatmul.f32.gmra.mxu0 %v2186
    %v2188 = vpop.f32.mrf.mxu0
    %v2189 = vadd.f32 %v2124, %v2188
    %2190 = vdwg.mxu0
    %2191 = vmatpush.msra.mxu0 0.0
    %2192 = vmatpush.msra.mxu0 0.0
    %2193 = vmatpush.msra.mxu0 0.0
    %2194 = vmatpush.msra.mxu0 0.0
    %2195 = vmatpush.msra.mxu0 0.0
    %2196 = vmatpush.msra.mxu0 0.0
    %2197 = vmatpush.msra.mxu0 0.0
    %2198 = vmatpush.msra.mxu0 0.0
    %v2199 = vand.u32 %v1066, 4294901760
    %v2200 = vsub.f32 %v1066, %v2199
    %2201 = vmatpush.msra.mxu0 %v2200
    %v2202 = vand.u32 %v1064, 4294901760
    %v2203 = vsub.f32 %v1064, %v2202
    %2204 = vmatpush.msra.mxu0 %v2203
    %v2205 = vand.u32 %v1062, 4294901760
    %v2206 = vsub.f32 %v1062, %v2205
    %2207 = vmatpush.msra.mxu0 %v2206
    %v2208 = vand.u32 %v1060, 4294901760
    %v2209 = vsub.f32 %v1060, %v2208
    %2210 = vmatpush.msra.mxu0 %v2209
    %v2211 = vand.u32 %v1058, 4294901760
    %v2212 = vsub.f32 %v1058, %v2211
    %2213 = vmatpush.msra.mxu0 %v2212
    %v2214 = vand.u32 %v1056, 4294901760
    %v2215 = vsub.f32 %v1056, %v2214
    %2216 = vmatpush.msra.mxu0 %v2215
    %v2217 = vand.u32 %v1054, 4294901760
    %v2218 = vsub.f32 %v1054, %v2217
    %2219 = vmatpush.msra.mxu0 %v2218
    %v2220 = vand.u32 %v1052, 4294901760
    %v2221 = vsub.f32 %v1052, %v2220
    %2222 = vmatpush.msra.mxu0 %v2221
    %v2223 = vand.u32 %v1068, 4294901760
    %v2224 = vsub.f32 %v1068, %v2223
    %2225 = vmatmul.f32.gmra.mxu0 %v2224
    %v2226 = vpop.f32.mrf.mxu0
    %v2227 = vadd.f32 %v2185, %v2226
    %v2228 = vand.u32 %v1071, 4294901760
    %v2229 = vsub.f32 %v1071, %v2228
    %2230 = vmatmul.f32.gmra.mxu0 %v2229
    %v2231 = vpop.f32.mrf.mxu0
    %v2232 = vadd.f32 %v2189, %v2231
    %2233 = vdwg.mxu0
    %2234 = vmatpush.msra.mxu0 0.0
    %2235 = vmatpush.msra.mxu0 0.0
    %2236 = vmatpush.msra.mxu0 0.0
    %2237 = vmatpush.msra.mxu0 0.0
    %2238 = vmatpush.msra.mxu0 0.0
    %2239 = vmatpush.msra.mxu0 0.0
    %2240 = vmatpush.msra.mxu0 0.0
    %2241 = vmatpush.msra.mxu0 0.0
    %v2242 = vand.u32 %v1066, 4294901760
    %2243 = vmatpush.msra.mxu0 %v2242
    %v2244 = vand.u32 %v1064, 4294901760
    %2245 = vmatpush.msra.mxu0 %v2244
    %v2246 = vand.u32 %v1062, 4294901760
    %2247 = vmatpush.msra.mxu0 %v2246
    %v2248 = vand.u32 %v1060, 4294901760
    %2249 = vmatpush.msra.mxu0 %v2248
    %v2250 = vand.u32 %v1058, 4294901760
    %2251 = vmatpush.msra.mxu0 %v2250
    %v2252 = vand.u32 %v1056, 4294901760
    %2253 = vmatpush.msra.mxu0 %v2252
    %v2254 = vand.u32 %v1054, 4294901760
    %2255 = vmatpush.msra.mxu0 %v2254
    %v2256 = vand.u32 %v1052, 4294901760
    %2257 = vmatpush.msra.mxu0 %v2256
    %v2258 = vand.u32 %v1068, 4294901760
    %v2259 = vsub.f32 %v1068, %v2258
    %v2260 = vand.u32 %v2259, 4294901760
    %2261 = vmatmul.f32.gmra.mxu0 %v2260
    %v2262 = vpop.f32.mrf.mxu0
    %v2263 = vadd.f32 %v2227, %v2262
    %v2264 = vand.u32 %v1071, 4294901760
    %v2265 = vsub.f32 %v1071, %v2264
    %v2266 = vand.u32 %v2265, 4294901760
    %2267 = vmatmul.f32.gmra.mxu0 %v2266
    %v2268 = vpop.f32.mrf.mxu0
    %v2269 = vadd.f32 %v2232, %v2268
    %2270 = vdwg.mxu0
    %2271 = vmatpush.msra.mxu0 0.0
    %2272 = vmatpush.msra.mxu0 0.0
    %2273 = vmatpush.msra.mxu0 0.0
    %2274 = vmatpush.msra.mxu0 0.0
    %2275 = vmatpush.msra.mxu0 0.0
    %2276 = vmatpush.msra.mxu0 0.0
    %2277 = vmatpush.msra.mxu0 0.0
    %2278 = vmatpush.msra.mxu0 0.0
    %v2279 = vand.u32 %v1066, 4294901760
    %v2280 = vsub.f32 %v1066, %v2279
    %v2281 = vand.u32 %v2280, 4294901760
    %2282 = vmatpush.msra.mxu0 %v2281
    %v2283 = vand.u32 %v1064, 4294901760
    %v2284 = vsub.f32 %v1064, %v2283
    %v2285 = vand.u32 %v2284, 4294901760
    %2286 = vmatpush.msra.mxu0 %v2285
    %v2287 = vand.u32 %v1062, 4294901760
    %v2288 = vsub.f32 %v1062, %v2287
    %v2289 = vand.u32 %v2288, 4294901760
    %2290 = vmatpush.msra.mxu0 %v2289
    %v2291 = vand.u32 %v1060, 4294901760
    %v2292 = vsub.f32 %v1060, %v2291
    %v2293 = vand.u32 %v2292, 4294901760
    %2294 = vmatpush.msra.mxu0 %v2293
    %v2295 = vand.u32 %v1058, 4294901760
    %v2296 = vsub.f32 %v1058, %v2295
    %v2297 = vand.u32 %v2296, 4294901760
    %2298 = vmatpush.msra.mxu0 %v2297
    %v2299 = vand.u32 %v1056, 4294901760
    %v2300 = vsub.f32 %v1056, %v2299
    %v2301 = vand.u32 %v2300, 4294901760
    %2302 = vmatpush.msra.mxu0 %v2301
    %v2303 = vand.u32 %v1054, 4294901760
    %v2304 = vsub.f32 %v1054, %v2303
    %v2305 = vand.u32 %v2304, 4294901760
    %2306 = vmatpush.msra.mxu0 %v2305
    %v2307 = vand.u32 %v1052, 4294901760
    %v2308 = vsub.f32 %v1052, %v2307
    %v2309 = vand.u32 %v2308, 4294901760
    %2310 = vmatpush.msra.mxu0 %v2309
    %v2311 = vand.u32 %v1068, 4294901760
    %2312 = vmatmul.f32.gmra.mxu0 %v2311
    %v2313 = vpop.f32.mrf.mxu0
    %v2314 = vadd.f32 %v2263, %v2313
    %v2315 = vand.u32 %v1071, 4294901760
    %2316 = vmatmul.f32.gmra.mxu0 %v2315
    %v2317 = vpop.f32.mrf.mxu0
    %v2318 = vadd.f32 %v2269, %v2317
    %2319 = vdwg.mxu0
    %2320 = vmatpush.msra.mxu0 0.0
    %2321 = vmatpush.msra.mxu0 0.0
    %2322 = vmatpush.msra.mxu0 0.0
    %2323 = vmatpush.msra.mxu0 0.0
    %2324 = vmatpush.msra.mxu0 0.0
    %2325 = vmatpush.msra.mxu0 0.0
    %2326 = vmatpush.msra.mxu0 0.0
    %2327 = vmatpush.msra.mxu0 0.0
    %v2328 = vand.u32 %v1066, 4294901760
    %2329 = vmatpush.msra.mxu0 %v2328
    %v2330 = vand.u32 %v1064, 4294901760
    %2331 = vmatpush.msra.mxu0 %v2330
    %v2332 = vand.u32 %v1062, 4294901760
    %2333 = vmatpush.msra.mxu0 %v2332
    %v2334 = vand.u32 %v1060, 4294901760
    %2335 = vmatpush.msra.mxu0 %v2334
    %v2336 = vand.u32 %v1058, 4294901760
    %2337 = vmatpush.msra.mxu0 %v2336
    %v2338 = vand.u32 %v1056, 4294901760
    %2339 = vmatpush.msra.mxu0 %v2338
    %v2340 = vand.u32 %v1054, 4294901760
    %2341 = vmatpush.msra.mxu0 %v2340
    %v2342 = vand.u32 %v1052, 4294901760
    %2343 = vmatpush.msra.mxu0 %v2342
    %v2344 = vand.u32 %v1068, 4294901760
    %2345 = vmatmul.f32.gmra.mxu0 %v2344
    %v2346 = vpop.f32.mrf.mxu0
    %v2347 = vadd.f32 %v2314, %v2346
    %v2348 = vand.u32 %v1071, 4294901760
    %2349 = vmatmul.f32.gmra.mxu0 %v2348
    %v2350 = vpop.f32.mrf.mxu0
    %v2351 = vadd.f32 %v2318, %v2350
    %2352 = vdwg.mxu0
    %v2353 = vxor.u32 %v1707, 2147483648
    %v2354 = vxor.u32 %v2347, 2147483648
    %v2355 = vxor.u32 %v1711, 2147483648
    %v2356 = vxor.u32 %v2351, 2147483648
    %v2357 = vmul.f32 %v2353, 1.442695
    %v2358 = vpow.pop %v2357
    %v2359 = vmul.f32 %v2354, 1.442695
    %v2360 = vpow.pop %v2359
    %v2361 = vmul.f32 %v2355, 1.442695
    %v2362 = vpow.pop %v2361
    %v2363 = vmul.f32 %v2356, 1.442695
    %v2364 = vpow.pop %v2363
    %v2365 = vadd.f32 %v2358, 1.0
    %v2366 = vadd.f32 %v2360, 1.0
    %v2367 = vadd.f32 %v2362, 1.0
    %v2368 = vadd.f32 %v2364, 1.0
    %v2369 = vrcp.pop %v2365
    %v2370 = vmul.f32 %v2365, %v2369
    %v2371 = vsub.f32 1.0, %v2370
    %v2372 = vmul.f32 %v2369, %v2371
    %v2373 = vadd.f32 %v2369, %v2372
    %vm2374 = vweird.f32 %v2365
    %vm2375 = vweird.f32 %v2369
    %vm2376 = vmor %vm2374, %vm2375
    %v2377 = vsel %vm2376, %v2369, %v2373
    %v2378 = vand.u32 2147483647, %v2365
    %vm2379 = vcmp.eq.f32.partialorder %v2378, 8.507059e+37
    %v2380 = vand.u32 %v2365, 2147483648
    %v2381 = vor.u32 1.1754944e-38, %v2380
    %v2382 = vsel %vm2379, %v2381, %v2377
    %v2383 = vmul.f32 1.0, %v2382
    %v2384 = vrcp.pop %v2366
    %v2385 = vmul.f32 %v2366, %v2384
    %v2386 = vsub.f32 1.0, %v2385
    %v2387 = vmul.f32 %v2384, %v2386
    %v2388 = vadd.f32 %v2384, %v2387
    %vm2389 = vweird.f32 %v2366
    %vm2390 = vweird.f32 %v2384
    %vm2391 = vmor %vm2389, %vm2390
    %v2392 = vsel %vm2391, %v2384, %v2388
    %v2393 = vand.u32 2147483647, %v2366
    %vm2394 = vcmp.eq.f32.partialorder %v2393, 8.507059e+37
    %v2395 = vand.u32 %v2366, 2147483648
    %v2396 = vor.u32 1.1754944e-38, %v2395
    %v2397 = vsel %vm2394, %v2396, %v2392
    %v2398 = vmul.f32 1.0, %v2397
    %v2399 = vrcp.pop %v2367
    %v2400 = vmul.f32 %v2367, %v2399
    %v2401 = vsub.f32 1.0, %v2400
    %v2402 = vmul.f32 %v2399, %v2401
    %v2403 = vadd.f32 %v2399, %v2402
    %vm2404 = vweird.f32 %v2367
    %vm2405 = vweird.f32 %v2399
    %vm2406 = vmor %vm2404, %vm2405
    %v2407 = vsel %vm2406, %v2399, %v2403
    %v2408 = vand.u32 2147483647, %v2367
    %vm2409 = vcmp.eq.f32.partialorder %v2408, 8.507059e+37
    %v2410 = vand.u32 %v2367, 2147483648
    %v2411 = vor.u32 1.1754944e-38, %v2410
    %v2412 = vsel %vm2409, %v2411, %v2407
    %v2413 = vmul.f32 1.0, %v2412
    %v2414 = vrcp.pop %v2368
    %v2415 = vmul.f32 %v2368, %v2414
    %v2416 = vsub.f32 1.0, %v2415
    %v2417 = vmul.f32 %v2414, %v2416
    %v2418 = vadd.f32 %v2414, %v2417
    %vm2419 = vweird.f32 %v2368
    %vm2420 = vweird.f32 %v2414
    %vm2421 = vmor %vm2419, %vm2420
    %v2422 = vsel %vm2421, %v2414, %v2418
    %v2423 = vand.u32 2147483647, %v2368
    %vm2424 = vcmp.eq.f32.partialorder %v2423, 8.507059e+37
    %v2425 = vand.u32 %v2368, 2147483648
    %v2426 = vor.u32 1.1754944e-38, %v2425
    %v2427 = vsel %vm2424, %v2426, %v2422
    %v2428 = vmul.f32 1.0, %v2427
    %v2429 = vlaneseq
    %v2430 = vshrl.u32 %v2429, 7
    %v2431 = vadd.s32 %v2430, 8
    %vm2432 = vcmp.lt.s32.totalorder %v2430, 0
    %v2433 = vsub.s32 0, %v2430
    %v2434 = vsel %vm2432, %v2433, %v2430
    %v2435 = vshrl.u32 %v2434, 3
    %v2436 = vand.u32 %v2434, 7
    %v2437 = vsub.s32 0, %v2436
    %v2438 = vsel %vm2432, %v2437, %v2436
    %vm2439 = vcmp.lt.s32.totalorder %v2431, 0
    %v2440 = vsub.s32 0, %v2431
    %v2441 = vsel %vm2439, %v2440, %v2431
    %v2442 = vshrl.u32 %v2441, 3
    %v2443 = vand.u32 %v2441, 7
    %v2444 = vsub.s32 0, %v2443
    %v2445 = vsel %vm2439, %v2444, %v2443
    %vm2446 = vcmp.ne.s32.totalorder %v2438, 0
    %vm2447 = vcmp.ne.s32.totalorder %v2445, 0
    %vm2448 = vcmp.lt.s32.totalorder %v2438, 0
    %vm2449 = vcmp.lt.s32.totalorder %v2445, 0
    %vm2450 = vmand %vm2448, %vm2446
    %vm2451 = vmand %vm2449, %vm2447
    %v2452 = vadd.s32 %v2438, 8
    %v2453 = vadd.s32 %v2445, 8
    %v2454 = vsel %vm2450, %v2452, %v2438
    %v2455 = vsel %vm2451, %v2453, %v2445
    %vm2456 = vcmp.eq.s32.totalorder %v2454, 0
    %vm2457 = vcmp.eq.s32.totalorder %v2455, 0
    %v2458 = vmul.f32 %v1017, %v2383
    %v2459 = vmul.f32 %v1013, %v2398
    %v2460 = vmul.f32 %v1018, %v2413
    %v2461 = vmul.f32 %v1014, %v2428
    %v2462 = vadd.f32 %v115, %v2458
    %v2463 = vadd.f32 %v116, %v2459
    %v2464 = vadd.f32 %v117, %v2460
    %v2465 = vadd.f32 %v118, %v2461
    %v2466 = vsel %vm2456, %v115, %v2462
    %v2467 = vsel %vm2456, %v116, %v2463
    %v2468 = vsel %vm2457, %v117, %v2464
    %v2469 = vsel %vm2457, %v118, %v2465
    %2470 = vst [vmem:[#allocation12] sm:$0xff] %v2466
    %2471 = vst.msk [vmem:[#allocation12 + $0x8] sm:$0xff] %vm989, %v2467
    %2472 = vst [vmem:[#allocation12 + $0x10] sm:$0xff] %v2468
    %2473 = vst.msk [vmem:[#allocation12 + $0x18] sm:$0xff] %vm989, %v2469
    // Predicated region
    $region58: #{tpu_custom_call.1} parent=1 // pred_check
      _
    $region59: #{tpu_custom_call.1} parent=1 // pred_check_branch
      %2475 = sbr.rel (0) target = $region61
    $region60: #{tpu_custom_call.1} parent=1 // pred_region
      %2477 = vsyncadd [#allocation5], 0
      %s2478 = sshll.u32 [#allocation12], 4
      %s2479 = int_to_ptr.vmem [resolvable:$true] %s2478
      %s2480 = sshll.u32 %s9, 4
      %s2481 = int_to_ptr.hbm [resolvable:$true] %s2480
      %2486 = dma.vmem_to_hbm [thread:$0]  %s2479, 512, %s2481, [#allocation5], 256, 256, 16
    $region61: #{tpu_custom_call.1} parent=1 // pred_fallthru
      _
    // Predicated region
    $region62: #{tpu_custom_call.1} parent=1 // pred_check
      _
    $region63: #{tpu_custom_call.1} parent=1 // pred_check_branch
      %2488 = sbr.rel (0) target = $region65
    $region64: #{tpu_custom_call.1} parent=1 // pred_region
      %2490 = dma.done [#allocation5], 512
    $region65: #{tpu_custom_call.1} parent=1 // pred_fallthru
      _
    %2491 = vsyncpa [#allocation4], 1
    %2492 = vsyncpa [#allocation7], 1
    %2493 = vsyncpa [#allocation10], 1
    %2494 = vsyncpa [#allocation5], 1

</llo_original>
